<compile_context>
chip_gen: v6e
topology: v6e:2x2x1
jax: 0.10.0
libtpu: 0.0.40
codegen_flags: <defaults>
</compile_context>

<pallas_src>
import math
from functools import partial

import jax
import jax.numpy as jnp
from jax import lax
from jax.experimental import pallas as pl
from jax.experimental.pallas import tpu as pltpu


# ---------------------------------------------------------------------------
# Hardware-derived budgets / tile helpers.
# ---------------------------------------------------------------------------
def _vmem_capacity_bytes():
    try:
        return int(pltpu.get_tpu_info().vmem_capacity_bytes)
    except Exception:
        return 64 << 20  # conservative default (v7x per-core VMEM)


def _round_up(n, m):
    return ((n + m - 1) // m) * m


def _pick_tile(dim, preferred):
    """Largest multiple of 128 <= preferred that divides dim, else the full dim."""
    if dim <= preferred:
        return dim
    t = (preferred // 128) * 128
    while t >= 128:
        if dim % t == 0:
            return t
        t -= 128
    return dim


# ---------------------------------------------------------------------------
# Kernel 1: stacked Bayesian linear  y[g] = x[g] @ w[g] + b[g]
#   grid = (G, M/tm, N/tn, K/tk); f32 accumulator resident across the K axis.
#   x/w tiles are bf16 (MXU), bias-add and accumulation in f32.
# ---------------------------------------------------------------------------
def _linear_kernel(x_ref, w_ref, b_ref, o_ref, acc_ref):
    @pl.when(pl.program_id(3) == 0)
    def _():
        acc_ref[...] = jnp.zeros_like(acc_ref)

    acc_ref[...] += jnp.dot(x_ref[...], w_ref[...],
                            preferred_element_type=jnp.float32)

    @pl.when(pl.program_id(3) == pl.num_programs(3) - 1)
    def _():
        o_ref[...] = (acc_ref[...] + b_ref[...]).astype(o_ref.dtype)


def stacked_bayes_linear(x, w, b, *, out_dtype):
    """x: (G, M, d_in) bf16, w: (G, d_in, d_out) bf16, b: (G, 1, d_out) f32
       -> (G, M, d_out) out_dtype."""
    G, M, d_in = x.shape
    d_out = w.shape[-1]

    cap = _vmem_capacity_bytes()
    budget = int(cap * 0.75)

    tk = _pick_tile(d_in, 512)
    tn = _pick_tile(d_out, 512)
    # Bigger row tiles on 128 MiB VMEM parts (v5e/v6e); smaller on v7x (64 MiB).
    tm_pref = 512 if cap >= (100 << 20) else 256
    tm = min(tm_pref, _round_up(M, 8))

    out_bytes = jnp.dtype(out_dtype).itemsize

    def footprint(tm_):
        return (2 * tm_ * tk * 2          # double-buffered bf16 x tiles
                + 2 * tk * tn * 2         # double-buffered bf16 weight tiles
                + 2 * tm_ * tn * out_bytes  # double-buffered output tiles
                + tm_ * tn * 4            # f32 accumulator scratch
                + 2 * tn * 4)             # bias

    while footprint(tm) > budget and tm > 64:
        tm = max(64, tm // 2)
    tm = max(8, (tm // 8) * 8)

    M_pad = _round_up(M, tm)
    # Guarantee >=2 blocks on the parallel axes so both v7x TensorCores get work.
    if G * (M_pad // tm) * (d_out // tn) < 2 and M_pad >= 16 and M_pad % 16 == 0:
        tm = M_pad // 2

    if M_pad != M:
        x = jnp.pad(x, ((0, 0), (0, M_pad - M), (0, 0)))

    grid = (G, M_pad // tm, d_out // tn, d_in // tk)
    out = pl.pallas_call(
        _linear_kernel,
        out_shape=jax.ShapeDtypeStruct((G, M_pad, d_out), out_dtype),
        grid=grid,
        in_specs=[
            pl.BlockSpec((None, tm, tk), lambda g, i, j, k: (g, i, k)),
            pl.BlockSpec((None, tk, tn), lambda g, i, j, k: (g, k, j)),
            pl.BlockSpec((None, 1, tn), lambda g, i, j, k: (g, 0, j)),
        ],
        out_specs=pl.BlockSpec((None, tm, tn), lambda g, i, j, k: (g, i, j)),
        scratch_shapes=[pltpu.VMEM((tm, tn), jnp.float32)],
        compiler_params=pltpu.CompilerParams(
            dimension_semantics=("parallel", "parallel", "parallel", "arbitrary"),
            vmem_limit_bytes=budget,
        ),
    )(x, w, b)
    return out[:, :M, :]


# ---------------------------------------------------------------------------
# Kernel 2: multi-head scaled-dot-product attention, one batch per grid step.
#   qkv block: (3, S, d_model) bf16 (q already pre-scaled by 1/sqrt(d_k)).
#   All heads processed back-to-back in-kernel; output is one lane-dense
#   (S, d_model) store per batch.  Softmax normalization is deferred and
#   applied to the (S, d_k) PV result via an approx EUP reciprocal.
# ---------------------------------------------------------------------------
def _attention_kernel(qkv_ref, o_ref, *, num_heads, d_k):
    q = qkv_ref[0]   # (S, d_model) bf16, pre-scaled
    k = qkv_ref[1]   # (S, d_model) bf16
    v = qkv_ref[2]   # (S, d_model) bf16

    outs = []
    for h in range(num_heads):
        sl = slice(h * d_k, (h + 1) * d_k)
        s = lax.dot_general(q[:, sl], k[:, sl], (((1,), (1,)), ((), ())),
                            preferred_element_type=jnp.float32)        # (S, S)
        m = jnp.max(s, axis=-1, keepdims=True)
        p = jnp.exp(s - m)
        l = jnp.sum(p, axis=-1, keepdims=True)
        acc = jnp.dot(p.astype(jnp.bfloat16), v[:, sl],
                      preferred_element_type=jnp.float32)               # (S, d_k)
        outs.append(acc * pl.reciprocal(l, approx=True))
    o_ref[...] = jnp.concatenate(outs, axis=-1).astype(o_ref.dtype)


def _mha_attention(qkv, *, num_heads, d_k):
    """qkv: (3, B, S, d_model) bf16 -> (B, S, d_model) bf16."""
    # TODO(synk): for long S (>~2k) add flash-style KV tiling (online softmax in VMEM
    # scratch) — required on v7x's 64 MiB VMEM; and split heads across grid for B==1.
    _, B, S, d_model = qkv.shape
    cap = _vmem_capacity_bytes()
    return pl.pallas_call(
        partial(_attention_kernel, num_heads=num_heads, d_k=d_k),
        out_shape=jax.ShapeDtypeStruct((B, S, d_model), jnp.bfloat16),
        grid=(B,),
        in_specs=[pl.BlockSpec((3, None, S, d_model), lambda b: (0, b, 0, 0))],
        out_specs=pl.BlockSpec((None, S, d_model), lambda b: (b, 0, 0)),
        compiler_params=pltpu.CompilerParams(
            dimension_semantics=("parallel",),
            vmem_limit_bytes=int(cap * 0.75),
        ),
    )(qkv)


# ---------------------------------------------------------------------------
# Wrapper: full MultiHeadAttention forward.
# ---------------------------------------------------------------------------
def sample_bayes_weights(params, eps, d_k):
    """W = mu + exp(log_sigma)*eps; transpose once to (in, out), cast weights to bf16.
       The 1/sqrt(d_k) attention scale is folded into Wq/bq (free, done once)."""
    scale = 1.0 / math.sqrt(d_k)
    sampled = {}
    for name in ("q", "k", "v", "o"):
        w = params[f"w{name}_mu"] + jnp.exp(params[f"w{name}_log_sigma"]) * eps[f"w{name}"]
        b = params[f"b{name}_mu"] + jnp.exp(params[f"b{name}_log_sigma"]) * eps[f"b{name}"]
        if name == "q":
            w = w * scale
            b = b * scale
        sampled[f"w_{name}"] = w.T.astype(jnp.bfloat16)              # (in, out) for x @ W
        sampled[f"b_{name}"] = b.reshape(1, -1).astype(jnp.float32)  # bias added in f32
    return sampled


def multi_head_attention(q, k, v, params, eps, *, num_heads, mask=None):
    """q/k/v: (B, S, d_model) f32. Returns (B, S, d_model) f32."""
    # TODO(synk): attention mask (masked_fill) is not plumbed through the Pallas path.
    assert mask is None, "mask is not supported in the Pallas path"
    B, S, d_model = q.shape
    assert d_model % num_heads == 0
    d_k = d_model // num_heads
    M = B * S

    sampled = sample_bayes_weights(params, eps, d_k)

    # Fused Q/K/V projection: stacked (3, M, d_model) activations vs (3, d, d) weights.
    x_qkv = jnp.stack([q.reshape(M, d_model).astype(jnp.bfloat16),
                       k.reshape(M, d_model).astype(jnp.bfloat16),
                       v.reshape(M, d_model).astype(jnp.bfloat16)], axis=0)
    w_qkv = jnp.stack([sampled["w_q"], sampled["w_k"], sampled["w_v"]], axis=0)
    b_qkv = jnp.stack([sampled["b_q"], sampled["b_k"], sampled["b_v"]], axis=0)

    qkv = stacked_bayes_linear(x_qkv, w_qkv, b_qkv, out_dtype=jnp.bfloat16)
    qkv = qkv.reshape(3, B, S, d_model)            # free reshape, no head transposes

    attn = _mha_attention(qkv, num_heads=num_heads, d_k=d_k)    # (B, S, d_model) bf16

    out = stacked_bayes_linear(attn.reshape(1, M, d_model),
                               sampled["w_o"][None], sampled["b_o"][None],
                               out_dtype=jnp.float32)
    return out[0].reshape(B, S, d_model)


# ---------------------------------------------------------------------------
# Parameter / noise construction (mirrors BayesLinear.reset_parameters and the
# per-forward torch.randn_like draws).
# ---------------------------------------------------------------------------
def init_params(key, d_model, prior_sigma=0.1):
    prior_log_sigma = math.log(prior_sigma)
    keys = jax.random.split(key, 8)
    stdv = 1.0 / math.sqrt(d_model)   # in_features = d_model for all four projections
    p = {}
    for i, name in enumerate(("q", "k", "v", "o")):
        p[f"w{name}_mu"] = jax.random.uniform(
            keys[2 * i], (d_model, d_model), jnp.float32, -stdv, stdv)
        p[f"w{name}_log_sigma"] = jnp.full((d_model, d_model), prior_log_sigma, jnp.float32)
        p[f"b{name}_mu"] = jax.random.uniform(
            keys[2 * i + 1], (d_model,), jnp.float32, -stdv, stdv)
        p[f"b{name}_log_sigma"] = jnp.full((d_model,), prior_log_sigma, jnp.float32)
    return p


def sample_eps(key, d_model):
    keys = jax.random.split(key, 8)
    e = {}
    for i, name in enumerate(("q", "k", "v", "o")):
        e[f"w{name}"] = jax.random.normal(keys[2 * i], (d_model, d_model), jnp.float32)
        e[f"b{name}"] = jax.random.normal(keys[2 * i + 1], (d_model,), jnp.float32)
    return e


# ---------------------------------------------------------------------------
# Pure-JAX f32 reference (same math as the PyTorch module with the given eps).
# ---------------------------------------------------------------------------
def reference_mha(q, k, v, params, eps, *, num_heads):
    B, S, d_model = q.shape
    d_k = d_model // num_heads

    def lin(x, name):
        w = params[f"w{name}_mu"] + jnp.exp(params[f"w{name}_log_sigma"]) * eps[f"w{name}"]
        b = params[f"b{name}_mu"] + jnp.exp(params[f"b{name}_log_sigma"]) * eps[f"b{name}"]
        return x @ w.T + b

    def split(x):
        return x.reshape(B, S, num_heads, d_k).transpose(0, 2, 1, 3)

    qh, kh, vh = split(lin(q, "q")), split(lin(k, "k")), split(lin(v, "v"))
    scores = jnp.einsum("bhqd,bhkd->bhqk", qh, kh) / math.sqrt(d_k)
    probs = jax.nn.softmax(scores, axis=-1)
    attn = jnp.einsum("bhqk,bhkd->bhqd", probs, vh)
    attn = attn.transpose(0, 2, 1, 3).reshape(B, S, d_model)
    return lin(attn, "o")


if __name__ == "__main__":
    B, S, d_model, num_heads = 2, 8, 32, 4
    root = jax.random.PRNGKey(0)
    k_q, k_k, k_v, k_p, k_e = jax.random.split(root, 5)

    q = jax.random.normal(k_q, (B, S, d_model), jnp.float32)
    k = jax.random.normal(k_k, (B, S, d_model), jnp.float32)
    v = jax.random.normal(k_v, (B, S, d_model), jnp.float32)
    params = init_params(k_p, d_model)
    eps = sample_eps(k_e, d_model)

    fwd = jax.jit(partial(multi_head_attention, num_heads=num_heads))
    out = jax.block_until_ready(fwd(q, k, v, params, eps))

    ref = reference_mha(q, k, v, params, eps, num_heads=num_heads)
    assert out.shape == (B, S, d_model)
    # bf16 MXU path vs pure-f32 reference: bf16-appropriate tolerance.
    assert jnp.allclose(out, ref, atol=6e-2, rtol=6e-2), "mismatch vs pure-JAX reference"

    print("KERNEL_OK")
</pallas_src>

<mosaic_0001>
module attributes {stable_mosaic.version = 11 : i64} {
  func.func @_attention_kernel(%arg0: i32, %arg1: memref<3x1x8x32xbf16, #tpu.memory_space<vmem>>, %arg2: memref<1x8x32xbf16, #tpu.memory_space<vmem>>) attributes {dimension_semantics = [#tpu.dimension_semantics<parallel>], iteration_bounds = array<i64: 2>, scalar_prefetch = 0 : i64, scratch_operands = 0 : i64, tpu.core_type = #tpu.core_type<tc>, window_params = [{transform_indices = @transform_0, window_bounds = array<i64: 3, 1, 8, 32>}, {transform_indices = @transform_1, window_bounds = array<i64: 1, 8, 32>}]} {
    %c0 = arith.constant 0 : index
    %c0_0 = arith.constant 0 : index
    %c0_1 = arith.constant 0 : index
    %c0_2 = arith.constant 0 : index
    %0 = vector.load %arg1[%c0, %c0_0, %c0_1, %c0_2] : memref<3x1x8x32xbf16, #tpu.memory_space<vmem>>, vector<1x1x8x32xbf16>
    %1 = vector.shape_cast %0 : vector<1x1x8x32xbf16> to vector<8x32xbf16>
    %c1 = arith.constant 1 : index
    %c0_3 = arith.constant 0 : index
    %c0_4 = arith.constant 0 : index
    %c0_5 = arith.constant 0 : index
    %2 = vector.load %arg1[%c1, %c0_3, %c0_4, %c0_5] : memref<3x1x8x32xbf16, #tpu.memory_space<vmem>>, vector<1x1x8x32xbf16>
    %3 = vector.shape_cast %2 : vector<1x1x8x32xbf16> to vector<8x32xbf16>
    %c2 = arith.constant 2 : index
    %c0_6 = arith.constant 0 : index
    %c0_7 = arith.constant 0 : index
    %c0_8 = arith.constant 0 : index
    %4 = vector.load %arg1[%c2, %c0_6, %c0_7, %c0_8] : memref<3x1x8x32xbf16, #tpu.memory_space<vmem>>, vector<1x1x8x32xbf16>
    %5 = vector.shape_cast %4 : vector<1x1x8x32xbf16> to vector<8x32xbf16>
    %6 = vector.extract_strided_slice %1 {offsets = [0, 0], sizes = [8, 8], strides = [1, 1]} : vector<8x32xbf16> to vector<8x8xbf16>
    %7 = vector.extract_strided_slice %3 {offsets = [0, 0], sizes = [8, 8], strides = [1, 1]} : vector<8x32xbf16> to vector<8x8xbf16>
    %cst = arith.constant dense<0.000000e+00> : vector<8x8xf32>
    %8 = tpu.matmul %6, %7, %cst {dimension_numbers = #tpu.dot_dimension_numbers<[1], [1], [0], [0], [0, 0, 1, 0], [], []>} : vector<8x8xbf16>, vector<8x8xbf16>, vector<8x8xf32> -> vector<8x8xf32>
    %cst_9 = arith.constant dense<0xFF800000> : vector<8xf32>
    %9 = vector.multi_reduction <maximumf>, %8, %cst_9 [1] : vector<8x8xf32> to vector<8xf32>
    %10 = vector.shape_cast %9 : vector<8xf32> to vector<8x1xf32>
    %11 = vector.broadcast %10 : vector<8x1xf32> to vector<8x8xf32>
    %12 = arith.subf %8, %11 : vector<8x8xf32>
    %13 = math.exp %12 : vector<8x8xf32>
    %cst_10 = arith.constant dense<0.000000e+00> : vector<8xf32>
    %14 = vector.multi_reduction <add>, %13, %cst_10 [1] : vector<8x8xf32> to vector<8xf32>
    %15 = vector.shape_cast %14 : vector<8xf32> to vector<8x1xf32>
    %16 = arith.truncf %13 : vector<8x8xf32> to vector<8x8xbf16>
    %17 = vector.extract_strided_slice %5 {offsets = [0, 0], sizes = [8, 8], strides = [1, 1]} : vector<8x32xbf16> to vector<8x8xbf16>
    %cst_11 = arith.constant dense<0.000000e+00> : vector<8x8xf32>
    %18 = tpu.matmul %16, %17, %cst_11 {dimension_numbers = #tpu.dot_dimension_numbers<[1], [0], [0], [1], [0, 0, 1, 1], [], []>} : vector<8x8xbf16>, vector<8x8xbf16>, vector<8x8xf32> -> vector<8x8xf32>
    %19 = tpu.reciprocal %15 {approx = true} : vector<8x1xf32> -> vector<8x1xf32>
    %20 = vector.broadcast %19 : vector<8x1xf32> to vector<8x8xf32>
    %21 = arith.mulf %18, %20 : vector<8x8xf32>
    %22 = vector.extract_strided_slice %1 {offsets = [0, 8], sizes = [8, 8], strides = [1, 1]} : vector<8x32xbf16> to vector<8x8xbf16>
    %23 = vector.extract_strided_slice %3 {offsets = [0, 8], sizes = [8, 8], strides = [1, 1]} : vector<8x32xbf16> to vector<8x8xbf16>
    %cst_12 = arith.constant dense<0.000000e+00> : vector<8x8xf32>
    %24 = tpu.matmul %22, %23, %cst_12 {dimension_numbers = #tpu.dot_dimension_numbers<[1], [1], [0], [0], [0, 0, 1, 0], [], []>} : vector<8x8xbf16>, vector<8x8xbf16>, vector<8x8xf32> -> vector<8x8xf32>
    %cst_13 = arith.constant dense<0xFF800000> : vector<8xf32>
    %25 = vector.multi_reduction <maximumf>, %24, %cst_13 [1] : vector<8x8xf32> to vector<8xf32>
    %26 = vector.shape_cast %25 : vector<8xf32> to vector<8x1xf32>
    %27 = vector.broadcast %26 : vector<8x1xf32> to vector<8x8xf32>
    %28 = arith.subf %24, %27 : vector<8x8xf32>
    %29 = math.exp %28 : vector<8x8xf32>
    %cst_14 = arith.constant dense<0.000000e+00> : vector<8xf32>
    %30 = vector.multi_reduction <add>, %29, %cst_14 [1] : vector<8x8xf32> to vector<8xf32>
    %31 = vector.shape_cast %30 : vector<8xf32> to vector<8x1xf32>
    %32 = arith.truncf %29 : vector<8x8xf32> to vector<8x8xbf16>
    %33 = vector.extract_strided_slice %5 {offsets = [0, 8], sizes = [8, 8], strides = [1, 1]} : vector<8x32xbf16> to vector<8x8xbf16>
    %cst_15 = arith.constant dense<0.000000e+00> : vector<8x8xf32>
    %34 = tpu.matmul %32, %33, %cst_15 {dimension_numbers = #tpu.dot_dimension_numbers<[1], [0], [0], [1], [0, 0, 1, 1], [], []>} : vector<8x8xbf16>, vector<8x8xbf16>, vector<8x8xf32> -> vector<8x8xf32>
    %35 = tpu.reciprocal %31 {approx = true} : vector<8x1xf32> -> vector<8x1xf32>
    %36 = vector.broadcast %35 : vector<8x1xf32> to vector<8x8xf32>
    %37 = arith.mulf %34, %36 : vector<8x8xf32>
    %38 = vector.extract_strided_slice %1 {offsets = [0, 16], sizes = [8, 8], strides = [1, 1]} : vector<8x32xbf16> to vector<8x8xbf16>
    %39 = vector.extract_strided_slice %3 {offsets = [0, 16], sizes = [8, 8], strides = [1, 1]} : vector<8x32xbf16> to vector<8x8xbf16>
    %cst_16 = arith.constant dense<0.000000e+00> : vector<8x8xf32>
    %40 = tpu.matmul %38, %39, %cst_16 {dimension_numbers = #tpu.dot_dimension_numbers<[1], [1], [0], [0], [0, 0, 1, 0], [], []>} : vector<8x8xbf16>, vector<8x8xbf16>, vector<8x8xf32> -> vector<8x8xf32>
    %cst_17 = arith.constant dense<0xFF800000> : vector<8xf32>
    %41 = vector.multi_reduction <maximumf>, %40, %cst_17 [1] : vector<8x8xf32> to vector<8xf32>
    %42 = vector.shape_cast %41 : vector<8xf32> to vector<8x1xf32>
    %43 = vector.broadcast %42 : vector<8x1xf32> to vector<8x8xf32>
    %44 = arith.subf %40, %43 : vector<8x8xf32>
    %45 = math.exp %44 : vector<8x8xf32>
    %cst_18 = arith.constant dense<0.000000e+00> : vector<8xf32>
    %46 = vector.multi_reduction <add>, %45, %cst_18 [1] : vector<8x8xf32> to vector<8xf32>
    %47 = vector.shape_cast %46 : vector<8xf32> to vector<8x1xf32>
    %48 = arith.truncf %45 : vector<8x8xf32> to vector<8x8xbf16>
    %49 = vector.extract_strided_slice %5 {offsets = [0, 16], sizes = [8, 8], strides = [1, 1]} : vector<8x32xbf16> to vector<8x8xbf16>
    %cst_19 = arith.constant dense<0.000000e+00> : vector<8x8xf32>
    %50 = tpu.matmul %48, %49, %cst_19 {dimension_numbers = #tpu.dot_dimension_numbers<[1], [0], [0], [1], [0, 0, 1, 1], [], []>} : vector<8x8xbf16>, vector<8x8xbf16>, vector<8x8xf32> -> vector<8x8xf32>
    %51 = tpu.reciprocal %47 {approx = true} : vector<8x1xf32> -> vector<8x1xf32>
    %52 = vector.broadcast %51 : vector<8x1xf32> to vector<8x8xf32>
    %53 = arith.mulf %50, %52 : vector<8x8xf32>
    %54 = vector.extract_strided_slice %1 {offsets = [0, 24], sizes = [8, 8], strides = [1, 1]} : vector<8x32xbf16> to vector<8x8xbf16>
    %55 = vector.extract_strided_slice %3 {offsets = [0, 24], sizes = [8, 8], strides = [1, 1]} : vector<8x32xbf16> to vector<8x8xbf16>
    %cst_20 = arith.constant dense<0.000000e+00> : vector<8x8xf32>
    %56 = tpu.matmul %54, %55, %cst_20 {dimension_numbers = #tpu.dot_dimension_numbers<[1], [1], [0], [0], [0, 0, 1, 0], [], []>} : vector<8x8xbf16>, vector<8x8xbf16>, vector<8x8xf32> -> vector<8x8xf32>
    %cst_21 = arith.constant dense<0xFF800000> : vector<8xf32>
    %57 = vector.multi_reduction <maximumf>, %56, %cst_21 [1] : vector<8x8xf32> to vector<8xf32>
    %58 = vector.shape_cast %57 : vector<8xf32> to vector<8x1xf32>
    %59 = vector.broadcast %58 : vector<8x1xf32> to vector<8x8xf32>
    %60 = arith.subf %56, %59 : vector<8x8xf32>
    %61 = math.exp %60 : vector<8x8xf32>
    %cst_22 = arith.constant dense<0.000000e+00> : vector<8xf32>
    %62 = vector.multi_reduction <add>, %61, %cst_22 [1] : vector<8x8xf32> to vector<8xf32>
    %63 = vector.shape_cast %62 : vector<8xf32> to vector<8x1xf32>
    %64 = arith.truncf %61 : vector<8x8xf32> to vector<8x8xbf16>
    %65 = vector.extract_strided_slice %5 {offsets = [0, 24], sizes = [8, 8], strides = [1, 1]} : vector<8x32xbf16> to vector<8x8xbf16>
    %cst_23 = arith.constant dense<0.000000e+00> : vector<8x8xf32>
    %66 = tpu.matmul %64, %65, %cst_23 {dimension_numbers = #tpu.dot_dimension_numbers<[1], [0], [0], [1], [0, 0, 1, 1], [], []>} : vector<8x8xbf16>, vector<8x8xbf16>, vector<8x8xf32> -> vector<8x8xf32>
    %67 = tpu.reciprocal %63 {approx = true} : vector<8x1xf32> -> vector<8x1xf32>
    %68 = vector.broadcast %67 : vector<8x1xf32> to vector<8x8xf32>
    %69 = arith.mulf %66, %68 : vector<8x8xf32>
    %70 = tpu.concatenate %21, %37, %53, %69 in 1 : vector<8x8xf32>, vector<8x8xf32>, vector<8x8xf32>, vector<8x8xf32> -> vector<8x32xf32>
    %71 = arith.truncf %70 : vector<8x32xf32> to vector<8x32xbf16>
    %c0_24 = arith.constant 0 : index
    %c0_25 = arith.constant 0 : index
    %c0_26 = arith.constant 0 : index
    %72 = vector.load %arg2[%c0_24, %c0_25, %c0_26] : memref<1x8x32xbf16, #tpu.memory_space<vmem>>, vector<1x8x32xbf16>
    %73 = vector.shape_cast %72 : vector<1x8x32xbf16> to vector<8x32xbf16>
    %74 = vector.shape_cast %71 : vector<8x32xbf16> to vector<1x8x32xbf16>
    tpu.vector_store %arg2[%c0_24, %c0_25, %c0_26], %74 {strides = array<i32>} : memref<1x8x32xbf16, #tpu.memory_space<vmem>>, vector<1x8x32xbf16>,
    return
  }
  func.func @transform_0(%arg0: i32) -> (i32, i32, i32, i32) {
    %c0_i32 = arith.constant 0 : i32
    %c0_i32_0 = arith.constant 0 : i32
    %c0_i32_1 = arith.constant 0 : i32
    %c0_i32_2 = arith.constant 0 : i32
    return %c0_i32, %arg0, %c0_i32_0, %c0_i32_1 : i32, i32, i32, i32
  }
  func.func @transform_1(%arg0: i32) -> (i32, i32, i32) {
    %c0_i32 = arith.constant 0 : i32
    %c0_i32_0 = arith.constant 0 : i32
    %c0_i32_1 = arith.constant 0 : i32
    return %arg0, %c0_i32, %c0_i32_0 : i32, i32, i32
  }
}

module attributes {stable_mosaic.version = 11 : i64} {
  func.func @_linear_kernel(%arg0: i32, %arg1: i32, %arg2: i32, %arg3: i32, %arg4: memref<1x16x32xbf16, #tpu.memory_space<vmem>>, %arg5: memref<1x32x32xbf16, #tpu.memory_space<vmem>>, %arg6: memref<1x1x32xf32, #tpu.memory_space<vmem>>, %arg7: memref<1x16x32xbf16, #tpu.memory_space<vmem>>, %arg8: memref<16x32xf32, #tpu.memory_space<vmem>>) attributes {dimension_semantics = [#tpu.dimension_semantics<parallel>, #tpu.dimension_semantics<parallel>, #tpu.dimension_semantics<parallel>, #tpu.dimension_semantics<arbitrary>], iteration_bounds = array<i64: 3, 1, 1, 1>, scalar_prefetch = 0 : i64, scratch_operands = 1 : i64, tpu.core_type = #tpu.core_type<tc>, window_params = [{transform_indices = @transform_0, window_bounds = array<i64: 1, 16, 32>}, {transform_indices = @transform_1, window_bounds = array<i64: 1, 32, 32>}, {transform_indices = @transform_2, window_bounds = array<i64: 1, 1, 32>}, {transform_indices = @transform_3, window_bounds = array<i64: 1, 16, 32>}]} {
    %c0_i32 = arith.constant 0 : i32
    %0 = arith.cmpi eq, %arg3, %c0_i32 : i32
    %1 = arith.extui %0 : i1 to i32
    %c0_i32_0 = arith.constant 0 : i32
    %2 = arith.cmpi ne, %1, %c0_i32_0 : i32
    scf.if %2 {
      %cst_12 = arith.constant 0.000000e+00 : f32
      %14 = vector.broadcast %cst_12 : f32 to vector<16x32xf32>
      %c0_13 = arith.constant 0 : index
      %c0_14 = arith.constant 0 : index
      %15 = vector.load %arg8[%c0_13, %c0_14] : memref<16x32xf32, #tpu.memory_space<vmem>>, vector<16x32xf32>
      tpu.vector_store %arg8[%c0_13, %c0_14], %14 {strides = array<i32>} : memref<16x32xf32, #tpu.memory_space<vmem>>, vector<16x32xf32>,
    } else {
    }
    %c0 = arith.constant 0 : index
    %c0_1 = arith.constant 0 : index
    %3 = vector.load %arg8[%c0, %c0_1] : memref<16x32xf32, #tpu.memory_space<vmem>>, vector<16x32xf32>
    %c0_2 = arith.constant 0 : index
    %c0_3 = arith.constant 0 : index
    %c0_4 = arith.constant 0 : index
    %4 = vector.load %arg4[%c0_2, %c0_3, %c0_4] : memref<1x16x32xbf16, #tpu.memory_space<vmem>>, vector<1x16x32xbf16>
    %5 = vector.shape_cast %4 : vector<1x16x32xbf16> to vector<16x32xbf16>
    %c0_5 = arith.constant 0 : index
    %c0_6 = arith.constant 0 : index
    %c0_7 = arith.constant 0 : index
    %6 = vector.load %arg5[%c0_5, %c0_6, %c0_7] : memref<1x32x32xbf16, #tpu.memory_space<vmem>>, vector<1x32x32xbf16>
    %7 = vector.shape_cast %6 : vector<1x32x32xbf16> to vector<32x32xbf16>
    %cst = arith.constant dense<0.000000e+00> : vector<16x32xf32>
    %8 = tpu.matmul %5, %7, %cst {dimension_numbers = #tpu.dot_dimension_numbers<[1], [0], [0], [1], [0, 0, 1, 1], [], []>} : vector<16x32xbf16>, vector<32x32xbf16>, vector<16x32xf32> -> vector<16x32xf32>
    %9 = arith.addf %3, %8 : vector<16x32xf32>
    %c0_8 = arith.constant 0 : index
    %c0_9 = arith.constant 0 : index
    %10 = vector.load %arg8[%c0_8, %c0_9] : memref<16x32xf32, #tpu.memory_space<vmem>>, vector<16x32xf32>
    tpu.vector_store %arg8[%c0_8, %c0_9], %9 {strides = array<i32>} : memref<16x32xf32, #tpu.memory_space<vmem>>, vector<16x32xf32>,
    %c0_i32_10 = arith.constant 0 : i32
    %11 = arith.cmpi eq, %arg3, %c0_i32_10 : i32
    %12 = arith.extui %11 : i1 to i32
    %c0_i32_11 = arith.constant 0 : i32
    %13 = arith.cmpi ne, %12, %c0_i32_11 : i32
    scf.if %13 {
      %c0_12 = arith.constant 0 : index
      %c0_13 = arith.constant 0 : index
      %14 = vector.load %arg8[%c0_12, %c0_13] : memref<16x32xf32, #tpu.memory_space<vmem>>, vector<16x32xf32>
      %c0_14 = arith.constant 0 : index
      %c0_15 = arith.constant 0 : index
      %c0_16 = arith.constant 0 : index
      %15 = vector.load %arg6[%c0_14, %c0_15, %c0_16] : memref<1x1x32xf32, #tpu.memory_space<vmem>>, vector<1x1x32xf32>
      %16 = vector.shape_cast %15 : vector<1x1x32xf32> to vector<1x32xf32>
      %17 = vector.broadcast %16 : vector<1x32xf32> to vector<16x32xf32>
      %18 = arith.addf %14, %17 : vector<16x32xf32>
      %19 = arith.truncf %18 : vector<16x32xf32> to vector<16x32xbf16>
      %c0_17 = arith.constant 0 : index
      %c0_18 = arith.constant 0 : index
      %c0_19 = arith.constant 0 : index
      %20 = vector.load %arg7[%c0_17, %c0_18, %c0_19] : memref<1x16x32xbf16, #tpu.memory_space<vmem>>, vector<1x16x32xbf16>
      %21 = vector.shape_cast %20 : vector<1x16x32xbf16> to vector<16x32xbf16>
      %22 = vector.shape_cast %19 : vector<16x32xbf16> to vector<1x16x32xbf16>
      tpu.vector_store %arg7[%c0_17, %c0_18, %c0_19], %22 {strides = array<i32>} : memref<1x16x32xbf16, #tpu.memory_space<vmem>>, vector<1x16x32xbf16>,
    } else {
    }
    return
  }
  func.func @transform_0(%arg0: i32, %arg1: i32, %arg2: i32, %arg3: i32) -> (i32, i32, i32) {
    %c0_i32 = arith.constant 0 : i32
    return %arg0, %arg1, %arg3 : i32, i32, i32
  }
  func.func @transform_1(%arg0: i32, %arg1: i32, %arg2: i32, %arg3: i32) -> (i32, i32, i32) {
    %c0_i32 = arith.constant 0 : i32
    return %arg0, %arg3, %arg2 : i32, i32, i32
  }
  func.func @transform_2(%arg0: i32, %arg1: i32, %arg2: i32, %arg3: i32) -> (i32, i32, i32) {
    %c0_i32 = arith.constant 0 : i32
    %c0_i32_0 = arith.constant 0 : i32
    return %arg0, %c0_i32, %arg2 : i32, i32, i32
  }
  func.func @transform_3(%arg0: i32, %arg1: i32, %arg2: i32, %arg3: i32) -> (i32, i32, i32) {
    %c0_i32 = arith.constant 0 : i32
    return %arg0, %arg1, %arg2 : i32, i32, i32
  }
}

module attributes {stable_mosaic.version = 11 : i64} {
  func.func @_linear_kernel(%arg0: i32, %arg1: i32, %arg2: i32, %arg3: i32, %arg4: memref<1x8x32xbf16, #tpu.memory_space<vmem>>, %arg5: memref<1x32x32xbf16, #tpu.memory_space<vmem>>, %arg6: memref<1x1x32xf32, #tpu.memory_space<vmem>>, %arg7: memref<1x8x32xf32, #tpu.memory_space<vmem>>, %arg8: memref<8x32xf32, #tpu.memory_space<vmem>>) attributes {dimension_semantics = [#tpu.dimension_semantics<parallel>, #tpu.dimension_semantics<parallel>, #tpu.dimension_semantics<parallel>, #tpu.dimension_semantics<arbitrary>], iteration_bounds = array<i64: 1, 2, 1, 1>, scalar_prefetch = 0 : i64, scratch_operands = 1 : i64, tpu.core_type = #tpu.core_type<tc>, window_params = [{transform_indices = @transform_0, window_bounds = array<i64: 1, 8, 32>}, {transform_indices = @transform_1, window_bounds = array<i64: 1, 32, 32>}, {transform_indices = @transform_2, window_bounds = array<i64: 1, 1, 32>}, {transform_indices = @transform_3, window_bounds = array<i64: 1, 8, 32>}]} {
    %c0_i32 = arith.constant 0 : i32
    %0 = arith.cmpi eq, %arg3, %c0_i32 : i32
    %1 = arith.extui %0 : i1 to i32
    %c0_i32_0 = arith.constant 0 : i32
    %2 = arith.cmpi ne, %1, %c0_i32_0 : i32
    scf.if %2 {
      %cst_12 = arith.constant 0.000000e+00 : f32
      %14 = vector.broadcast %cst_12 : f32 to vector<8x32xf32>
      %c0_13 = arith.constant 0 : index
      %c0_14 = arith.constant 0 : index
      %15 = vector.load %arg8[%c0_13, %c0_14] : memref<8x32xf32, #tpu.memory_space<vmem>>, vector<8x32xf32>
      tpu.vector_store %arg8[%c0_13, %c0_14], %14 {strides = array<i32>} : memref<8x32xf32, #tpu.memory_space<vmem>>, vector<8x32xf32>,
    } else {
    }
    %c0 = arith.constant 0 : index
    %c0_1 = arith.constant 0 : index
    %3 = vector.load %arg8[%c0, %c0_1] : memref<8x32xf32, #tpu.memory_space<vmem>>, vector<8x32xf32>
    %c0_2 = arith.constant 0 : index
    %c0_3 = arith.constant 0 : index
    %c0_4 = arith.constant 0 : index
    %4 = vector.load %arg4[%c0_2, %c0_3, %c0_4] : memref<1x8x32xbf16, #tpu.memory_space<vmem>>, vector<1x8x32xbf16>
    %5 = vector.shape_cast %4 : vector<1x8x32xbf16> to vector<8x32xbf16>
    %c0_5 = arith.constant 0 : index
    %c0_6 = arith.constant 0 : index
    %c0_7 = arith.constant 0 : index
    %6 = vector.load %arg5[%c0_5, %c0_6, %c0_7] : memref<1x32x32xbf16, #tpu.memory_space<vmem>>, vector<1x32x32xbf16>
    %7 = vector.shape_cast %6 : vector<1x32x32xbf16> to vector<32x32xbf16>
    %cst = arith.constant dense<0.000000e+00> : vector<8x32xf32>
    %8 = tpu.matmul %5, %7, %cst {dimension_numbers = #tpu.dot_dimension_numbers<[1], [0], [0], [1], [0, 0, 1, 1], [], []>} : vector<8x32xbf16>, vector<32x32xbf16>, vector<8x32xf32> -> vector<8x32xf32>
    %9 = arith.addf %3, %8 : vector<8x32xf32>
    %c0_8 = arith.constant 0 : index
    %c0_9 = arith.constant 0 : index
    %10 = vector.load %arg8[%c0_8, %c0_9] : memref<8x32xf32, #tpu.memory_space<vmem>>, vector<8x32xf32>
    tpu.vector_store %arg8[%c0_8, %c0_9], %9 {strides = array<i32>} : memref<8x32xf32, #tpu.memory_space<vmem>>, vector<8x32xf32>,
    %c0_i32_10 = arith.constant 0 : i32
    %11 = arith.cmpi eq, %arg3, %c0_i32_10 : i32
    %12 = arith.extui %11 : i1 to i32
    %c0_i32_11 = arith.constant 0 : i32
    %13 = arith.cmpi ne, %12, %c0_i32_11 : i32
    scf.if %13 {
      %c0_12 = arith.constant 0 : index
      %c0_13 = arith.constant 0 : index
      %14 = vector.load %arg8[%c0_12, %c0_13] : memref<8x32xf32, #tpu.memory_space<vmem>>, vector<8x32xf32>
      %c0_14 = arith.constant 0 : index
      %c0_15 = arith.constant 0 : index
      %c0_16 = arith.constant 0 : index
      %15 = vector.load %arg6[%c0_14, %c0_15, %c0_16] : memref<1x1x32xf32, #tpu.memory_space<vmem>>, vector<1x1x32xf32>
      %16 = vector.shape_cast %15 : vector<1x1x32xf32> to vector<1x32xf32>
      %17 = vector.broadcast %16 : vector<1x32xf32> to vector<8x32xf32>
      %18 = arith.addf %14, %17 : vector<8x32xf32>
      %c0_17 = arith.constant 0 : index
      %c0_18 = arith.constant 0 : index
      %c0_19 = arith.constant 0 : index
      %19 = vector.load %arg7[%c0_17, %c0_18, %c0_19] : memref<1x8x32xf32, #tpu.memory_space<vmem>>, vector<1x8x32xf32>
      %20 = vector.shape_cast %19 : vector<1x8x32xf32> to vector<8x32xf32>
      %21 = vector.shape_cast %18 : vector<8x32xf32> to vector<1x8x32xf32>
      tpu.vector_store %arg7[%c0_17, %c0_18, %c0_19], %21 {strides = array<i32>} : memref<1x8x32xf32, #tpu.memory_space<vmem>>, vector<1x8x32xf32>,
    } else {
    }
    return
  }
  func.func @transform_0(%arg0: i32, %arg1: i32, %arg2: i32, %arg3: i32) -> (i32, i32, i32) {
    %c0_i32 = arith.constant 0 : i32
    return %arg0, %arg1, %arg3 : i32, i32, i32
  }
  func.func @transform_1(%arg0: i32, %arg1: i32, %arg2: i32, %arg3: i32) -> (i32, i32, i32) {
    %c0_i32 = arith.constant 0 : i32
    return %arg0, %arg3, %arg2 : i32, i32, i32
  }
  func.func @transform_2(%arg0: i32, %arg1: i32, %arg2: i32, %arg3: i32) -> (i32, i32, i32) {
    %c0_i32 = arith.constant 0 : i32
    %c0_i32_0 = arith.constant 0 : i32
    return %arg0, %c0_i32, %arg2 : i32, i32, i32
  }
  func.func @transform_3(%arg0: i32, %arg1: i32, %arg2: i32, %arg3: i32) -> (i32, i32, i32) {
    %c0_i32 = arith.constant 0 : i32
    return %arg0, %arg1, %arg2 : i32, i32, i32
  }
}

</mosaic_0001>

<llo_original>
// kernel: multi_head_attention.5
$region0: #{multi_head_attention.5}
  #allocation0 [shape = 'u32[]', space=smem, size = 0x4, offset = 0x4, fixed_abs, tag = 'smem constant byte address 0x4 - core index']
  #allocation1 [shape = 'u32[144,128]{1,0:T(1,128)}', space=vmem, size = 0x12000, scoped, tag = 'internal scratch']
  #allocation2 [shape = 'f32[8,32]{1,0:T(8,128)}', space=vmem, size = 0x1000, scoped, tag = 'scratch operand']
  %s0 = inlined_call_operand.vmem [shape: bf16[1,16,32], index: 0, kind: input, shape index: {}]
  %s1 = inlined_call_operand.vmem [shape: bf16[1,32,32], index: 1, kind: input, shape index: {}]
  %s2 = inlined_call_operand.vmem [shape: f32[1,1,32], index: 2, kind: input, shape index: {}]
  %s3 = inlined_call_operand.hbm [shape: f32[1,16,32], index: 3, kind: output, shape index: {}]
  %s4 = sld [smem:[#allocation0]]
  $region53: #{multi_head_attention.5} parent=0
    _
  %s6 = ssub.s32 1, %s4
  %s7 = scalar_select 0, %s6, %s4
  $region1: #{multi_head_attention.5} parent=0
    #allocation3 [shape = 'u8[8192]{0}', space=vmem, size = 0x2000, scoped, tag = 'output window, operand 0']
    #allocation4 [shape = 's32[2]{0}', space=sflag, size = 0x8, scoped, tag = 'scoped memory for multi_head_attention.5']
    %8 = vsyncpa [#allocation4], 0
    %s9 = scalar_lea.sflag [#allocation4], 1
    %10 = vsyncpa %s9, 0
    loop: start=0, step=1, limit=4
    $region2: #{multi_head_attention.5} parent=1 // loop_pre_header
      _
    $region3: #{multi_head_attention.5} parent=1 // loop_header
      %s12 = sphi 0, %s16
      %p13 = scmp.ge.s32.totalorder %s12, 4
      %s19 = sphi 0, %s45
      %s20 = sphi 0, %s41
      %s21 = sphi 0, %s37
      %s22 = sphi 0, %s33
      %s23 = sphi 0, %s19
      %s24 = sphi 0, %s20
      %s25 = sphi 0, %s21
      %s26 = sphi 0, %s22
      %s27 = sphi 0, %s23
      %s28 = sphi 0, %s24
      %s29 = sphi 0, %s25
      %s30 = sphi 0, %s26
      %s52 = sphi 0, %s54
      %s55 = sphi 0, %s52
      %s56 = sphi 0, %s55
      %s72 = sphi 0, %s56
      %s82 = sphi 0, %s84
      %s85 = sphi 0, %s82
      %s86 = sphi 0, %s85
      %s102 = sphi 0, %s86
      %s110 = sphi 0, %s112
      %s113 = sphi 0, %s110
      %s114 = sphi 0, %s113
      %s130 = sphi 0, %s114
      %s140 = sphi 0, %s142
      %s143 = sphi 0, %s140
      %s144 = sphi 0, %s143
      %s160 = sphi 0, %s144
    $region4: #{multi_head_attention.5} parent=1 // loop_header_branch
      %15 = sbr.rel (%p13) target = $region8
    $region5: #{multi_head_attention.5} parent=1 // loop_body
      %s17 = ssub.s32 %s12, 1
      %s18 = ssub.s32 %s12, 2
      %s31 = sadd.s32 1, %s22
      %p32 = scmp.ge.s32.totalorder %s31, 1
      %s33 = scalar_select %p32, 0, %s31
      %s34 = sadd.s32 1, %s21
      %s35 = scalar_select %p32, %s34, %s21
      %p36 = scmp.ge.s32.totalorder %s35, 1
      %s37 = scalar_select %p36, 0, %s35
      %s38 = sadd.s32 1, %s20
      %s39 = scalar_select %p36, %s38, %s20
      %p40 = scmp.ge.s32.totalorder %s39, 2
      %s41 = scalar_select %p40, 0, %s39
      %s42 = sadd.s32 1, %s19
      %s43 = scalar_select %p40, %s42, %s19
      %p44 = scmp.ge.s32.totalorder %s43, 1
      %s45 = scalar_select %p44, 0, %s43
      %s46 = ssub.s32 %s19, %s45
      %s47 = ssub.s32 %s20, %s41
      %s48 = sor.u32 %s46, %s47
      %s49 = ssub.s32 %s22, %s33
      %s50 = sor.u32 %s48, %s49
      %p51 = scmp.eq.s32.totalorder %s50, 0
      %s53 = sadd.s32 %s52, 1
      %s54 = scalar_select %p51, %s52, %s53
      %p57 = pneg %p51
      %p58 = scmp.eq.s32.totalorder %s12, 1
      %p59 = por %p57, %p58
      %p60 = scmp.ne.s32.totalorder %s52, %s55
      %p61 = scmp.eq.s32.totalorder %s12, 0
      %p62 = por %p60, %p61
      %p63 = scmp.ne.s32.totalorder %s52, %s55
      %p64 = scmp.eq.s32.totalorder %s17, 1
      %p65 = por %p63, %p64
      %p66 = scmp.ne.s32.totalorder %s55, %s56
      %p67 = scmp.eq.s32.totalorder %s17, 0
      %p68 = por %p66, %p67
      %p69 = scmp.ne.s32.totalorder %s55, %s56
      %p70 = scmp.eq.s32.totalorder %s18, 1
      %p71 = por %p69, %p70
      %p73 = scmp.ne.s32.totalorder %s56, %s72
      %p74 = scmp.eq.s32.totalorder %s18, 0
      %p75 = por %p73, %p74
      %s76 = ssub.s32 %s19, %s45
      %s77 = ssub.s32 %s22, %s33
      %s78 = sor.u32 %s76, %s77
      %s79 = ssub.s32 %s21, %s37
      %s80 = sor.u32 %s78, %s79
      %p81 = scmp.eq.s32.totalorder %s80, 0
      %s83 = sadd.s32 %s82, 1
      %s84 = scalar_select %p81, %s82, %s83
      %p87 = pneg %p81
      %p88 = scmp.eq.s32.totalorder %s12, 1
      %p89 = por %p87, %p88
      %p90 = scmp.ne.s32.totalorder %s82, %s85
      %p91 = scmp.eq.s32.totalorder %s12, 0
      %p92 = por %p90, %p91
      %p93 = scmp.ne.s32.totalorder %s82, %s85
      %p94 = scmp.eq.s32.totalorder %s17, 1
      %p95 = por %p93, %p94
      %p96 = scmp.ne.s32.totalorder %s85, %s86
      %p97 = scmp.eq.s32.totalorder %s17, 0
      %p98 = por %p96, %p97
      %p99 = scmp.ne.s32.totalorder %s85, %s86
      %p100 = scmp.eq.s32.totalorder %s18, 1
      %p101 = por %p99, %p100
      %p103 = scmp.ne.s32.totalorder %s86, %s102
      %p104 = scmp.eq.s32.totalorder %s18, 0
      %p105 = por %p103, %p104
      %s106 = ssub.s32 %s19, %s45
      %s107 = ssub.s32 %s21, %s37
      %s108 = sor.u32 %s106, %s107
      %p109 = scmp.eq.s32.totalorder %s108, 0
      %s111 = sadd.s32 %s110, 1
      %s112 = scalar_select %p109, %s110, %s111
      %p115 = pneg %p109
      %p116 = scmp.eq.s32.totalorder %s12, 1
      %p117 = por %p115, %p116
      %p118 = scmp.ne.s32.totalorder %s110, %s113
      %p119 = scmp.eq.s32.totalorder %s12, 0
      %p120 = por %p118, %p119
      %p121 = scmp.ne.s32.totalorder %s110, %s113
      %p122 = scmp.eq.s32.totalorder %s17, 1
      %p123 = por %p121, %p122
      %p124 = scmp.ne.s32.totalorder %s113, %s114
      %p125 = scmp.eq.s32.totalorder %s17, 0
      %p126 = por %p124, %p125
      %p127 = scmp.ne.s32.totalorder %s113, %s114
      %p128 = scmp.eq.s32.totalorder %s18, 1
      %p129 = por %p127, %p128
      %p131 = scmp.ne.s32.totalorder %s114, %s130
      %p132 = scmp.eq.s32.totalorder %s18, 0
      %p133 = por %p131, %p132
      %s134 = ssub.s32 %s19, %s45
      %s135 = ssub.s32 %s20, %s41
      %s136 = sor.u32 %s134, %s135
      %s137 = ssub.s32 %s21, %s37
      %s138 = sor.u32 %s136, %s137
      %p139 = scmp.eq.s32.totalorder %s138, 0
      %s141 = sadd.s32 %s140, 1
      %s142 = scalar_select %p139, %s140, %s141
      %p145 = pneg %p139
      %p146 = scmp.eq.s32.totalorder %s12, 1
      %p147 = por %p145, %p146
      %p148 = scmp.ne.s32.totalorder %s140, %s143
      %p149 = scmp.eq.s32.totalorder %s12, 0
      %p150 = por %p148, %p149
      %p151 = scmp.ne.s32.totalorder %s140, %s143
      %p152 = scmp.eq.s32.totalorder %s17, 1
      %p153 = por %p151, %p152
      %p154 = scmp.ne.s32.totalorder %s143, %s144
      %p155 = scmp.eq.s32.totalorder %s17, 0
      %p156 = por %p154, %p155
      %p157 = scmp.ne.s32.totalorder %s143, %s144
      %p158 = scmp.eq.s32.totalorder %s18, 1
      %p159 = por %p157, %p158
      %p161 = scmp.ne.s32.totalorder %s144, %s160
      %p162 = scmp.eq.s32.totalorder %s18, 0
      %p163 = por %p161, %p162
      %p164 = scmp.le.s32.totalorder 1, %s12
      %p165 = scmp.lt.s32.totalorder %s12, 3
      %p166 = pnand %p164, %p165
      %p167 = pneg %p166
      // Predicated region
      $region9: #{multi_head_attention.5} parent=5 // pred_check
        _
      $region10: #{multi_head_attention.5} parent=5 // pred_check_branch
        %169 = sbr.rel (%p166) target = $region12
      $region11: #{multi_head_attention.5} parent=5 // pred_region
        %s170 = ssub.s32 %s12, 1
        // Predicated region
        $region13: #{multi_head_attention.5} parent=11 // pred_check
          %p171 = pneg %p98
        $region14: #{multi_head_attention.5} parent=11 // pred_check_branch
          %173 = sbr.rel (%p171) target = $region16
        $region15: #{multi_head_attention.5} parent=11 // pred_region
          %s174 = smul.u32 4, %s26
          %p175 = scmp.lt.s32.totalorder %s23, 0
          %s176 = scalar_select %p175, %s23, 0
          %p177 = scmp.lt.s32.totalorder %s174, 3
          %s178 = scalar_select %p177, %s174, 3
          %p179 = scmp.lt.s32.totalorder %s25, 0
          %s180 = scalar_select %p179, %s25, 0
          %s181 = sadd.s32 %s180, %s178
          %s182 = smul.addr %s176, 4
          %s183 = sadd.s32 %s181, %s182
          %s184 = smul.addr %s183, 4
          %s185 = scalar_lea.vmem %s1, %s184
          %s186 = smul.u32 4, %s26
        $region16: #{multi_head_attention.5} parent=11 // pred_fallthru
          _
        // Predicated region
        $region17: #{multi_head_attention.5} parent=11 // pred_check
          %p187 = pneg %p126
        $region18: #{multi_head_attention.5} parent=11 // pred_check_branch
          %189 = sbr.rel (%p187) target = $region20
        $region19: #{multi_head_attention.5} parent=11 // pred_region
          %p190 = scmp.lt.s32.totalorder %s23, 0
          %s191 = scalar_select %p190, %s23, 0
          %p192 = scmp.lt.s32.totalorder %s25, 0
          %s193 = scalar_select %p192, %s25, 0
          %s194 = sadd.s32 %s193, %s191
          %s195 = scalar_lea.vmem %s2, %s194
        $region20: #{multi_head_attention.5} parent=11 // pred_fallthru
          _
      $region12: #{multi_head_attention.5} parent=5 // pred_fallthru
        _
      %p196 = scmp.lt.s32.totalorder %s12, 2
      // Predicated region
      $region21: #{multi_head_attention.5} parent=5 // pred_check
        %p197 = pneg %p196
      $region22: #{multi_head_attention.5} parent=5 // pred_check_branch
        %199 = sbr.rel (%p197) target = $region24
      $region23: #{multi_head_attention.5} parent=5 // pred_region
        // Predicated region
        $region25: #{multi_head_attention.5} parent=23 // pred_check
          %p200 = pneg %p62
        $region26: #{multi_head_attention.5} parent=23 // pred_check_branch
          %202 = sbr.rel (%p200) target = $region28
        $region27: #{multi_head_attention.5} parent=23 // pred_region
          %p203 = scmp.lt.s32.totalorder %s19, 0
          %s204 = scalar_select %p203, %s19, 0
          %p205 = scmp.lt.s32.totalorder %s20, 1
          %s206 = scalar_select %p205, %s20, 1
          %p207 = scmp.lt.s32.totalorder %s22, 0
          %s208 = scalar_select %p207, %s22, 0
          %s209 = sadd.s32 %s208, %s206
          %s210 = smul.addr %s204, 2
          %s211 = sadd.s32 %s209, %s210
          %s212 = smul.addr %s211, 4
          %s213 = scalar_lea.vmem %s0, %s212
        $region28: #{multi_head_attention.5} parent=23 // pred_fallthru
          _
      $region24: #{multi_head_attention.5} parent=5 // pred_fallthru
        _
      %p214 = scmp.le.s32.totalorder 1, %s12
      %p215 = scmp.lt.s32.totalorder %s12, 3
      %p216 = pnand %p214, %p215
      %p217 = pneg %p216
      // Predicated region
      $region29: #{multi_head_attention.5} parent=5 // pred_check
        _
      $region30: #{multi_head_attention.5} parent=5 // pred_check_branch
        %219 = sbr.rel (%p216) target = $region32
      $region31: #{multi_head_attention.5} parent=5 // pred_region
        %s220 = ssub.s32 %s12, 1
        %p221 = scmp.lt.s32.totalorder %s23, 0
        %s222 = scalar_select %p221, %s23, 0
        %p223 = scmp.lt.s32.totalorder %s24, 1
        %s224 = scalar_select %p223, %s24, 1
        %p225 = scmp.lt.s32.totalorder %s26, 0
        %s226 = scalar_select %p225, %s26, 0
        %s227 = sadd.s32 %s226, %s224
        %s228 = smul.addr %s222, 2
        %s229 = sadd.s32 %s227, %s228
        %s230 = smul.addr %s229, 4
        %s231 = scalar_lea.vmem %s0, %s230
        %p232 = pneg %p68
        %p233 = pneg %p65
        %s234 = smul.u32 4, %s26
        %p235 = scmp.lt.s32.totalorder %s23, 0
        %s236 = scalar_select %p235, %s23, 0
        %p237 = scmp.lt.s32.totalorder %s234, 3
        %s238 = scalar_select %p237, %s234, 3
        %p239 = scmp.lt.s32.totalorder %s25, 0
        %s240 = scalar_select %p239, %s25, 0
        %s241 = sadd.s32 %s240, %s238
        %s242 = smul.addr %s236, 4
        %s243 = sadd.s32 %s241, %s242
        %s244 = smul.addr %s243, 4
        %s245 = scalar_lea.vmem %s1, %s244
        %p246 = pneg %p98
        %p247 = pneg %p95
        %p248 = scmp.lt.s32.totalorder %s23, 0
        %s249 = scalar_select %p248, %s23, 0
        %p250 = scmp.lt.s32.totalorder %s25, 0
        %s251 = scalar_select %p250, %s25, 0
        %s252 = sadd.s32 %s251, %s249
        %s253 = scalar_lea.vmem %s2, %s252
        %p254 = pneg %p126
        %p255 = pneg %p123
        %p256 = pneg %p156
        %p257 = pneg %p153
        %s258 = sand.u32 %s143, 1
        %s259 = scalar_lea.sflag [#allocation4], %s258
        %s260 = sand.u32 %s143, 1
        %s261 = smul.addr %s260, 8
        %s262 = scalar_lea.vmem [#allocation3], %s261
        %p263 = scmp.lt.s32.totalorder %s23, 0
        %s264 = scalar_select %p263, %s23, 0
        %p265 = scmp.lt.s32.totalorder %s24, 1
        %s266 = scalar_select %p265, %s24, 1
        %p267 = scmp.lt.s32.totalorder %s26, 0
        %s268 = scalar_select %p267, %s26, 0
        %s269 = sadd.s32 %s268, %s266
        %s270 = smul.addr %s264, 2
        %s271 = sadd.s32 %s269, %s270
        %s272 = smul.addr %s271, 4
        %s273 = scalar_lea.vmem %s0, %s272
        %s274 = smul.u32 4, %s26
        %p275 = scmp.lt.s32.totalorder %s23, 0
        %s276 = scalar_select %p275, %s23, 0
        %p277 = scmp.lt.s32.totalorder %s274, 3
        %s278 = scalar_select %p277, %s274, 3
        %p279 = scmp.lt.s32.totalorder %s25, 0
        %s280 = scalar_select %p279, %s25, 0
        %s281 = sadd.s32 %s280, %s278
        %s282 = smul.addr %s276, 4
        %s283 = sadd.s32 %s281, %s282
        %s284 = smul.addr %s283, 4
        %s285 = scalar_lea.vmem %s1, %s284
        %s286 = smul.u32 4, %s26
        %p287 = scmp.lt.s32.totalorder %s23, 0
        %s288 = scalar_select %p287, %s23, 0
        %p289 = scmp.lt.s32.totalorder %s25, 0
        %s290 = scalar_select %p289, %s25, 0
        %s291 = sadd.s32 %s290, %s288
        %s292 = scalar_lea.vmem %s2, %s291
        %p294 = scmp.eq.s32.totalorder %s26, 0
        // Predicated region
        $region33: #{multi_head_attention.5} parent=31 // pred_check
          %p295 = pneg %p294
        $region34: #{multi_head_attention.5} parent=31 // pred_check_branch
          %297 = sbr.rel (%p295) target = $region36
        $region35: #{multi_head_attention.5} parent=31 // pred_region
          %vm298 = vcmask 261120
          %299 = vst.msk [vmem:[#allocation2] sm:$0xff] %vm298, 0.0
        $region36: #{multi_head_attention.5} parent=31 // pred_fallthru
          _
        %v300 = vld [vmem:[#allocation2] sm:$0xff]
        %v301 = vld [vmem:[%s273] sm:$0xf]
        %v302 = vld [vmem:[%s285] sm:$0xf]
        %v303 = vld [vmem:[%s285 + $0x4] sm:$0xf]
        %v304 = vld [vmem:[%s285 + $0x8] sm:$0xf]
        %v305 = vld [vmem:[%s285 + $0xc] sm:$0xf]
        %v310 = vunpack.c.l.b16 %v302
        %v311 = vunpack.c.l.b16 %v303
        %v312 = vunpack.c.l.b16 %v304
        %v313 = vunpack.c.l.b16 %v305
        %v314 = vpack.c.b16 %v311, %v310
        %v315 = vpack.c.b16 %v313, %v312
        %vm318 = vcmask 261120
        %v320 = vsel %vm318, %v301, 0
        %322 = vmatprep.subr.bf16.mxu0 0
        %323 = vmatpush1.bf16.msra.mxu0 0
        %324 = vmatprep.subr.bf16.mxu0 0
        %325 = vmatpush1.bf16.msra.mxu0 0
        %326 = vmatprep.subr.bf16.mxu0 0
        %327 = vmatpush1.bf16.msra.mxu0 0
        %328 = vmatprep.subr.bf16.mxu0 0
        %329 = vmatpush1.bf16.msra.mxu0 0
        %330 = vmatprep.subr.bf16.mxu0 0
        %331 = vmatpush1.bf16.msra.mxu0 0
        %332 = vmatprep.subr.bf16.mxu0 0
        %333 = vmatpush1.bf16.msra.mxu0 0
        %334 = vmatprep.subr.bf16.mxu0 0
        %335 = vmatpush1.bf16.msra.mxu0 %v315
        %336 = vmatprep.subr.bf16.mxu0 0
        %337 = vmatpush1.bf16.msra.mxu0 %v314
        %338 = vmatprep.subr.bf16.mxu0 0
        %339 = vmatpush2.bf16.msra.mxu0 0
        %340 = vmatprep.subr.bf16.mxu0 0
        %341 = vmatpush2.bf16.msra.mxu0 0
        %342 = vmatprep.subr.bf16.mxu0 0
        %343 = vmatpush2.bf16.msra.mxu0 0
        %344 = vmatprep.subr.bf16.mxu0 0
        %345 = vmatpush2.bf16.msra.mxu0 0
        %346 = vmatprep.subr.bf16.mxu0 0
        %347 = vmatpush2.bf16.msra.mxu0 0
        %348 = vmatprep.subr.bf16.mxu0 0
        %349 = vmatpush2.bf16.msra.mxu0 0
        %350 = vmatprep.subr.bf16.mxu0 0
        %351 = vmatpush2.bf16.msra.mxu0 0
        %352 = vmatprep.subr.bf16.mxu0 0
        %353 = vmatpush2.bf16.msra.mxu0 0
        %354 = vmatprep.mubr.bf16.mxu0 0
        %355 = vmatmul.mubr.bf16.gmra.mxu0 %v320
        %v356 = vpop.f32.mrf.mxu0
        %v357 = vadd.f32 0.0, %v356
        %v358 = vpop.f32.mrf.mxu0
        %v359 = vpop.f32.mrf.mxu0
        %v360 = vpop.f32.mrf.mxu0
        %361 = vdwg.mxu0
        %v362 = vadd.f32 %v300, %v357
        %363 = vst.msk [vmem:[#allocation2] sm:$0xff] %vm318, %v362
        // Predicated region
        $region37: #{multi_head_attention.5} parent=31 // pred_check
          %p364 = pneg %p294
        $region38: #{multi_head_attention.5} parent=31 // pred_check_branch
          %366 = sbr.rel (%p364) target = $region40
        $region39: #{multi_head_attention.5} parent=31 // pred_region
          %v367 = vld [vmem:[#allocation2] sm:$0xff]
          %v368 = vld [vmem:[%s292] sm:$0x1]
          %v370 = vlaneseq
          %v371 = vshrl.u32 %v370, 7
          %v372 = vsub.s32 0, %v371
          %v373 = vrot.slane %v368, %v372
          %v375 = vadd.f32 %v367, %v373
          %376 = vst.msk [vmem:[%s262] sm:$0xff] %vm318, %v375
        $region40: #{multi_head_attention.5} parent=31 // pred_fallthru
          _
        %s377 = sand.u32 %s143, 1
        %s378 = scalar_lea.sflag [#allocation4], %s377
        %s379 = sand.u32 %s143, 1
        %s380 = smul.addr %s379, 8
        %s381 = scalar_lea.vmem [#allocation3], %s380
        // Predicated region
        $region41: #{multi_head_attention.5} parent=31 // pred_check
          %p382 = pneg %p153
        $region42: #{multi_head_attention.5} parent=31 // pred_check_branch
          %384 = sbr.rel (%p382) target = $region44
        $region43: #{multi_head_attention.5} parent=31 // pred_region
          %s386 = ssub.s32 128, 128
          %387 = vsyncadd %s378, %s386
          %s388 = sadd.s32 %s25, %s24
          %s389 = smul.addr %s23, 2
          %s390 = sadd.s32 %s388, %s389
          %s391 = smul.addr %s390, 128
          %s392 = scalar_lea.hbm %s3, %s391
          %s394 = sshll.u32 %s381, 4
          %s395 = int_to_ptr.vmem [resolvable:$true] %s394
          %397 = dma.vmem_to_hbm [thread:$0]  %s395, 128, %s392, %s378
        $region44: #{multi_head_attention.5} parent=31 // pred_fallthru
          _
      $region32: #{multi_head_attention.5} parent=5 // pred_fallthru
        _
      %p398 = scmp.le.s32.totalorder 2, %s12
      // Predicated region
      $region45: #{multi_head_attention.5} parent=5 // pred_check
        %p399 = pneg %p398
      $region46: #{multi_head_attention.5} parent=5 // pred_check_branch
        %401 = sbr.rel (%p399) target = $region48
      $region47: #{multi_head_attention.5} parent=5 // pred_region
        %s402 = ssub.s32 %s12, 2
        // Predicated region
        $region49: #{multi_head_attention.5} parent=47 // pred_check
          %p403 = pneg %p159
        $region50: #{multi_head_attention.5} parent=47 // pred_check_branch
          %405 = sbr.rel (%p403) target = $region52
        $region51: #{multi_head_attention.5} parent=47 // pred_region
          %s406 = sand.u32 %s144, 1
          %s407 = scalar_lea.sflag [#allocation4], %s406
          %s408 = sand.u32 %s144, 1
          %s409 = smul.addr %s408, 8
          %s410 = scalar_lea.vmem [#allocation3], %s409
          %411 = dma.done %s407, 128
        $region52: #{multi_head_attention.5} parent=47 // pred_fallthru
          _
      $region48: #{multi_head_attention.5} parent=5 // pred_fallthru
        _
    $region6: #{multi_head_attention.5} parent=1 // loop_footer
      %s16 = sadd.s32 1, %s12
    $region7: #{multi_head_attention.5} parent=1 // loop_footer_branch
      %11 = sbr.rel target = $region3
    $region8: #{multi_head_attention.5} parent=1 // loop_exit
      _
    %412 = vsyncpa [#allocation4], 1
    %s413 = scalar_lea.sflag [#allocation4], 1
    %414 = vsyncpa %s413, 1

// kernel: multi_head_attention.3
$region0: #{multi_head_attention.3}
  #allocation0 [shape = 'u32[]', space=smem, size = 0x4, offset = 0x4, fixed_abs, tag = 'smem constant byte address 0x4 - core index']
  #allocation1 [shape = 'u32[144,128]{1,0:T(1,128)}', space=vmem, size = 0x12000, scoped, tag = 'internal scratch']
  #allocation2 [shape = 'f32[16,32]{1,0:T(8,128)}', space=vmem, size = 0x2000, scoped, tag = 'scratch operand']
  %s0 = inlined_call_operand.vmem [shape: bf16[3,16,32], index: 0, kind: input, shape index: {}]
  %s1 = inlined_call_operand.vmem [shape: bf16[3,32,32], index: 1, kind: input, shape index: {}]
  %s2 = inlined_call_operand.vmem [shape: f32[3,1,32], index: 2, kind: input, shape index: {}]
  %s3 = inlined_call_operand.vmem [shape: bf16[3,16,32], index: 3, kind: output, shape index: {}]
  %s4 = sld [smem:[#allocation0]]
  $region53: #{multi_head_attention.3} parent=0
    _
  %s6 = ssub.s32 1, %s4
  %s7 = scalar_select 0, %s6, %s4
  loop: start=0, step=1, limit=5
  $region2: #{multi_head_attention.3} parent=0 // loop_pre_header
    _
  $region3: #{multi_head_attention.3} parent=0 // loop_header
    %s9 = sphi 0, %s13
    %p10 = scmp.ge.s32.totalorder %s9, 5
    %s16 = sphi 0, %s42
    %s17 = sphi 0, %s38
    %s18 = sphi 0, %s34
    %s19 = sphi 0, %s30
    %s20 = sphi 0, %s16
    %s21 = sphi 0, %s17
    %s22 = sphi 0, %s18
    %s23 = sphi 0, %s19
    %s24 = sphi 0, %s20
    %s25 = sphi 0, %s21
    %s26 = sphi 0, %s22
    %s27 = sphi 0, %s23
    %s49 = sphi 0, %s51
    %s52 = sphi 0, %s49
    %s53 = sphi 0, %s52
    %s69 = sphi 0, %s53
    %s79 = sphi 0, %s81
    %s82 = sphi 0, %s79
    %s83 = sphi 0, %s82
    %s99 = sphi 0, %s83
    %s107 = sphi 0, %s109
    %s110 = sphi 0, %s107
    %s111 = sphi 0, %s110
    %s127 = sphi 0, %s111
    %s137 = sphi 0, %s139
    %s140 = sphi 0, %s137
    %s141 = sphi 0, %s140
    %s157 = sphi 0, %s141
  $region4: #{multi_head_attention.3} parent=0 // loop_header_branch
    %12 = sbr.rel (%p10) target = $region8
  $region5: #{multi_head_attention.3} parent=0 // loop_body
    %s14 = ssub.s32 %s9, 1
    %s15 = ssub.s32 %s9, 2
    %s28 = sadd.s32 1, %s19
    %p29 = scmp.ge.s32.totalorder %s28, 1
    %s30 = scalar_select %p29, 0, %s28
    %s31 = sadd.s32 1, %s18
    %s32 = scalar_select %p29, %s31, %s18
    %p33 = scmp.ge.s32.totalorder %s32, 1
    %s34 = scalar_select %p33, 0, %s32
    %s35 = sadd.s32 1, %s17
    %s36 = scalar_select %p33, %s35, %s17
    %p37 = scmp.ge.s32.totalorder %s36, 1
    %s38 = scalar_select %p37, 0, %s36
    %s39 = sadd.s32 1, %s16
    %s40 = scalar_select %p37, %s39, %s16
    %p41 = scmp.ge.s32.totalorder %s40, 3
    %s42 = scalar_select %p41, 0, %s40
    %s43 = ssub.s32 %s16, %s42
    %s44 = ssub.s32 %s17, %s38
    %s45 = sor.u32 %s43, %s44
    %s46 = ssub.s32 %s19, %s30
    %s47 = sor.u32 %s45, %s46
    %p48 = scmp.eq.s32.totalorder %s47, 0
    %s50 = sadd.s32 %s49, 1
    %s51 = scalar_select %p48, %s49, %s50
    %p54 = pneg %p48
    %p55 = scmp.eq.s32.totalorder %s9, 2
    %p56 = por %p54, %p55
    %p57 = scmp.ne.s32.totalorder %s49, %s52
    %p58 = scmp.eq.s32.totalorder %s9, 0
    %p59 = por %p57, %p58
    %p60 = scmp.ne.s32.totalorder %s49, %s52
    %p61 = scmp.eq.s32.totalorder %s14, 2
    %p62 = por %p60, %p61
    %p63 = scmp.ne.s32.totalorder %s52, %s53
    %p64 = scmp.eq.s32.totalorder %s14, 0
    %p65 = por %p63, %p64
    %p66 = scmp.ne.s32.totalorder %s52, %s53
    %p67 = scmp.eq.s32.totalorder %s15, 2
    %p68 = por %p66, %p67
    %p70 = scmp.ne.s32.totalorder %s53, %s69
    %p71 = scmp.eq.s32.totalorder %s15, 0
    %p72 = por %p70, %p71
    %s73 = ssub.s32 %s16, %s42
    %s74 = ssub.s32 %s19, %s30
    %s75 = sor.u32 %s73, %s74
    %s76 = ssub.s32 %s18, %s34
    %s77 = sor.u32 %s75, %s76
    %p78 = scmp.eq.s32.totalorder %s77, 0
    %s80 = sadd.s32 %s79, 1
    %s81 = scalar_select %p78, %s79, %s80
    %p84 = pneg %p78
    %p85 = scmp.eq.s32.totalorder %s9, 2
    %p86 = por %p84, %p85
    %p87 = scmp.ne.s32.totalorder %s79, %s82
    %p88 = scmp.eq.s32.totalorder %s9, 0
    %p89 = por %p87, %p88
    %p90 = scmp.ne.s32.totalorder %s79, %s82
    %p91 = scmp.eq.s32.totalorder %s14, 2
    %p92 = por %p90, %p91
    %p93 = scmp.ne.s32.totalorder %s82, %s83
    %p94 = scmp.eq.s32.totalorder %s14, 0
    %p95 = por %p93, %p94
    %p96 = scmp.ne.s32.totalorder %s82, %s83
    %p97 = scmp.eq.s32.totalorder %s15, 2
    %p98 = por %p96, %p97
    %p100 = scmp.ne.s32.totalorder %s83, %s99
    %p101 = scmp.eq.s32.totalorder %s15, 0
    %p102 = por %p100, %p101
    %s103 = ssub.s32 %s16, %s42
    %s104 = ssub.s32 %s18, %s34
    %s105 = sor.u32 %s103, %s104
    %p106 = scmp.eq.s32.totalorder %s105, 0
    %s108 = sadd.s32 %s107, 1
    %s109 = scalar_select %p106, %s107, %s108
    %p112 = pneg %p106
    %p113 = scmp.eq.s32.totalorder %s9, 2
    %p114 = por %p112, %p113
    %p115 = scmp.ne.s32.totalorder %s107, %s110
    %p116 = scmp.eq.s32.totalorder %s9, 0
    %p117 = por %p115, %p116
    %p118 = scmp.ne.s32.totalorder %s107, %s110
    %p119 = scmp.eq.s32.totalorder %s14, 2
    %p120 = por %p118, %p119
    %p121 = scmp.ne.s32.totalorder %s110, %s111
    %p122 = scmp.eq.s32.totalorder %s14, 0
    %p123 = por %p121, %p122
    %p124 = scmp.ne.s32.totalorder %s110, %s111
    %p125 = scmp.eq.s32.totalorder %s15, 2
    %p126 = por %p124, %p125
    %p128 = scmp.ne.s32.totalorder %s111, %s127
    %p129 = scmp.eq.s32.totalorder %s15, 0
    %p130 = por %p128, %p129
    %s131 = ssub.s32 %s16, %s42
    %s132 = ssub.s32 %s17, %s38
    %s133 = sor.u32 %s131, %s132
    %s134 = ssub.s32 %s18, %s34
    %s135 = sor.u32 %s133, %s134
    %p136 = scmp.eq.s32.totalorder %s135, 0
    %s138 = sadd.s32 %s137, 1
    %s139 = scalar_select %p136, %s137, %s138
    %p142 = pneg %p136
    %p143 = scmp.eq.s32.totalorder %s9, 2
    %p144 = por %p142, %p143
    %p145 = scmp.ne.s32.totalorder %s137, %s140
    %p146 = scmp.eq.s32.totalorder %s9, 0
    %p147 = por %p145, %p146
    %p148 = scmp.ne.s32.totalorder %s137, %s140
    %p149 = scmp.eq.s32.totalorder %s14, 2
    %p150 = por %p148, %p149
    %p151 = scmp.ne.s32.totalorder %s140, %s141
    %p152 = scmp.eq.s32.totalorder %s14, 0
    %p153 = por %p151, %p152
    %p154 = scmp.ne.s32.totalorder %s140, %s141
    %p155 = scmp.eq.s32.totalorder %s15, 2
    %p156 = por %p154, %p155
    %p158 = scmp.ne.s32.totalorder %s141, %s157
    %p159 = scmp.eq.s32.totalorder %s15, 0
    %p160 = por %p158, %p159
    %p161 = scmp.le.s32.totalorder 1, %s9
    %p162 = scmp.lt.s32.totalorder %s9, 4
    %p163 = pnand %p161, %p162
    %p164 = pneg %p163
    // Predicated region
    $region9: #{multi_head_attention.3} parent=5 // pred_check
      _
    $region10: #{multi_head_attention.3} parent=5 // pred_check_branch
      %166 = sbr.rel (%p163) target = $region12
    $region11: #{multi_head_attention.3} parent=5 // pred_region
      %s167 = ssub.s32 %s9, 1
    $region12: #{multi_head_attention.3} parent=5 // pred_fallthru
      _
    %p168 = scmp.lt.s32.totalorder %s9, 3
    // Predicated region
    $region13: #{multi_head_attention.3} parent=5 // pred_check
      %p169 = pneg %p168
    $region14: #{multi_head_attention.3} parent=5 // pred_check_branch
      %171 = sbr.rel (%p169) target = $region16
    $region15: #{multi_head_attention.3} parent=5 // pred_region
      // Predicated region
      $region17: #{multi_head_attention.3} parent=15 // pred_check
        %p172 = pneg %p59
      $region18: #{multi_head_attention.3} parent=15 // pred_check_branch
        %174 = sbr.rel (%p172) target = $region20
      $region19: #{multi_head_attention.3} parent=15 // pred_region
        %s175 = smul.u32 2, %s17
        %p176 = scmp.lt.s32.totalorder %s16, 2
        %s177 = scalar_select %p176, %s16, 2
        %p178 = scmp.lt.s32.totalorder %s175, 1
        %s179 = scalar_select %p178, %s175, 1
        %p180 = scmp.lt.s32.totalorder %s19, 0
        %s181 = scalar_select %p180, %s19, 0
        %s182 = sadd.s32 %s181, %s179
        %s183 = smul.addr %s177, 2
        %s184 = sadd.s32 %s182, %s183
        %s185 = smul.addr %s184, 4
        %s186 = scalar_lea.vmem %s0, %s185
        %s187 = smul.u32 2, %s17
      $region20: #{multi_head_attention.3} parent=15 // pred_fallthru
        _
      // Predicated region
      $region21: #{multi_head_attention.3} parent=15 // pred_check
        %p188 = pneg %p89
      $region22: #{multi_head_attention.3} parent=15 // pred_check_branch
        %190 = sbr.rel (%p188) target = $region24
      $region23: #{multi_head_attention.3} parent=15 // pred_region
        %s191 = smul.u32 4, %s19
        %p192 = scmp.lt.s32.totalorder %s16, 2
        %s193 = scalar_select %p192, %s16, 2
        %p194 = scmp.lt.s32.totalorder %s191, 3
        %s195 = scalar_select %p194, %s191, 3
        %p196 = scmp.lt.s32.totalorder %s18, 0
        %s197 = scalar_select %p196, %s18, 0
        %s198 = sadd.s32 %s197, %s195
        %s199 = smul.addr %s193, 4
        %s200 = sadd.s32 %s198, %s199
        %s201 = smul.addr %s200, 4
        %s202 = scalar_lea.vmem %s1, %s201
        %s203 = smul.u32 4, %s19
      $region24: #{multi_head_attention.3} parent=15 // pred_fallthru
        _
      // Predicated region
      $region25: #{multi_head_attention.3} parent=15 // pred_check
        %p204 = pneg %p117
      $region26: #{multi_head_attention.3} parent=15 // pred_check_branch
        %206 = sbr.rel (%p204) target = $region28
      $region27: #{multi_head_attention.3} parent=15 // pred_region
        %p207 = scmp.lt.s32.totalorder %s16, 2
        %s208 = scalar_select %p207, %s16, 2
        %p209 = scmp.lt.s32.totalorder %s18, 0
        %s210 = scalar_select %p209, %s18, 0
        %s211 = sadd.s32 %s210, %s208
        %s212 = scalar_lea.vmem %s2, %s211
      $region28: #{multi_head_attention.3} parent=15 // pred_fallthru
        _
    $region16: #{multi_head_attention.3} parent=5 // pred_fallthru
      _
    %p213 = scmp.le.s32.totalorder 1, %s9
    %p214 = scmp.lt.s32.totalorder %s9, 4
    %p215 = pnand %p213, %p214
    %p216 = pneg %p215
    // Predicated region
    $region29: #{multi_head_attention.3} parent=5 // pred_check
      _
    $region30: #{multi_head_attention.3} parent=5 // pred_check_branch
      %218 = sbr.rel (%p215) target = $region32
    $region31: #{multi_head_attention.3} parent=5 // pred_region
      %s219 = ssub.s32 %s9, 1
      %s220 = smul.u32 2, %s21
      %p221 = scmp.lt.s32.totalorder %s20, 2
      %s222 = scalar_select %p221, %s20, 2
      %p223 = scmp.lt.s32.totalorder %s220, 1
      %s224 = scalar_select %p223, %s220, 1
      %p225 = scmp.lt.s32.totalorder %s23, 0
      %s226 = scalar_select %p225, %s23, 0
      %s227 = sadd.s32 %s226, %s224
      %s228 = smul.addr %s222, 2
      %s229 = sadd.s32 %s227, %s228
      %s230 = smul.addr %s229, 4
      %s231 = scalar_lea.vmem %s0, %s230
      %p232 = pneg %p65
      %p233 = pneg %p62
      %s234 = smul.u32 4, %s23
      %p235 = scmp.lt.s32.totalorder %s20, 2
      %s236 = scalar_select %p235, %s20, 2
      %p237 = scmp.lt.s32.totalorder %s234, 3
      %s238 = scalar_select %p237, %s234, 3
      %p239 = scmp.lt.s32.totalorder %s22, 0
      %s240 = scalar_select %p239, %s22, 0
      %s241 = sadd.s32 %s240, %s238
      %s242 = smul.addr %s236, 4
      %s243 = sadd.s32 %s241, %s242
      %s244 = smul.addr %s243, 4
      %s245 = scalar_lea.vmem %s1, %s244
      %p246 = pneg %p95
      %p247 = pneg %p92
      %p248 = scmp.lt.s32.totalorder %s20, 2
      %s249 = scalar_select %p248, %s20, 2
      %p250 = scmp.lt.s32.totalorder %s22, 0
      %s251 = scalar_select %p250, %s22, 0
      %s252 = sadd.s32 %s251, %s249
      %s253 = scalar_lea.vmem %s2, %s252
      %p254 = pneg %p123
      %p255 = pneg %p120
      %p256 = pneg %p153
      %p257 = pneg %p150
      %s258 = smul.u32 2, %s21
      %p259 = scmp.lt.s32.totalorder %s20, 2
      %s260 = scalar_select %p259, %s20, 2
      %p261 = scmp.lt.s32.totalorder %s258, 1
      %s262 = scalar_select %p261, %s258, 1
      %p263 = scmp.lt.s32.totalorder %s22, 0
      %s264 = scalar_select %p263, %s22, 0
      %s265 = sadd.s32 %s264, %s262
      %s266 = smul.addr %s260, 2
      %s267 = sadd.s32 %s265, %s266
      %s268 = smul.addr %s267, 4
      %s269 = scalar_lea.vmem %s3, %s268
      %s270 = smul.u32 2, %s21
      %p271 = scmp.lt.s32.totalorder %s20, 2
      %s272 = scalar_select %p271, %s20, 2
      %p273 = scmp.lt.s32.totalorder %s270, 1
      %s274 = scalar_select %p273, %s270, 1
      %p275 = scmp.lt.s32.totalorder %s23, 0
      %s276 = scalar_select %p275, %s23, 0
      %s277 = sadd.s32 %s276, %s274
      %s278 = smul.addr %s272, 2
      %s279 = sadd.s32 %s277, %s278
      %s280 = smul.addr %s279, 4
      %s281 = scalar_lea.vmem %s0, %s280
      %s282 = smul.u32 2, %s21
      %s283 = smul.u32 4, %s23
      %p284 = scmp.lt.s32.totalorder %s20, 2
      %s285 = scalar_select %p284, %s20, 2
      %p286 = scmp.lt.s32.totalorder %s283, 3
      %s287 = scalar_select %p286, %s283, 3
      %p288 = scmp.lt.s32.totalorder %s22, 0
      %s289 = scalar_select %p288, %s22, 0
      %s290 = sadd.s32 %s289, %s287
      %s291 = smul.addr %s285, 4
      %s292 = sadd.s32 %s290, %s291
      %s293 = smul.addr %s292, 4
      %s294 = scalar_lea.vmem %s1, %s293
      %s295 = smul.u32 4, %s23
      %p296 = scmp.lt.s32.totalorder %s20, 2
      %s297 = scalar_select %p296, %s20, 2
      %p298 = scmp.lt.s32.totalorder %s22, 0
      %s299 = scalar_select %p298, %s22, 0
      %s300 = sadd.s32 %s299, %s297
      %s301 = scalar_lea.vmem %s2, %s300
      %s302 = smul.u32 2, %s21
      %p303 = scmp.lt.s32.totalorder %s20, 2
      %s304 = scalar_select %p303, %s20, 2
      %p305 = scmp.lt.s32.totalorder %s302, 1
      %s306 = scalar_select %p305, %s302, 1
      %p307 = scmp.lt.s32.totalorder %s22, 0
      %s308 = scalar_select %p307, %s22, 0
      %s309 = sadd.s32 %s308, %s306
      %s310 = smul.addr %s304, 2
      %s311 = sadd.s32 %s309, %s310
      %s312 = smul.addr %s311, 4
      %s313 = scalar_lea.vmem %s3, %s312
      %s314 = smul.u32 2, %s21
      %p316 = scmp.eq.s32.totalorder %s23, 0
      // Predicated region
      $region33: #{multi_head_attention.3} parent=31 // pred_check
        %p317 = pneg %p316
      $region34: #{multi_head_attention.3} parent=31 // pred_check_branch
        %319 = sbr.rel (%p317) target = $region36
      $region35: #{multi_head_attention.3} parent=31 // pred_region
        %vm320 = vcmask 261120
        %321 = vst.msk [vmem:[#allocation2] sm:$0xff] %vm320, 0.0
        %322 = vst.msk [vmem:[#allocation2 + $0x8] sm:$0xff] %vm320, 0.0
      $region36: #{multi_head_attention.3} parent=31 // pred_fallthru
        _
      %v323 = vld [vmem:[#allocation2] sm:$0xff]
      %v324 = vld [vmem:[#allocation2 + $0x8] sm:$0xff]
      %v325 = vld [vmem:[%s281] sm:$0xf]
      %v326 = vld [vmem:[%s281 + $0x4] sm:$0xf]
      %v327 = vld [vmem:[%s294] sm:$0xf]
      %v328 = vld [vmem:[%s294 + $0x4] sm:$0xf]
      %v329 = vld [vmem:[%s294 + $0x8] sm:$0xf]
      %v330 = vld [vmem:[%s294 + $0xc] sm:$0xf]
      %v333 = vunpack.c.l.b16 %v325
      %v334 = vunpack.c.l.b16 %v326
      %v335 = vpack.c.b16 %v334, %v333
      %v340 = vunpack.c.l.b16 %v327
      %v341 = vunpack.c.l.b16 %v328
      %v342 = vunpack.c.l.b16 %v329
      %v343 = vunpack.c.l.b16 %v330
      %v344 = vpack.c.b16 %v341, %v340
      %v345 = vpack.c.b16 %v343, %v342
      %vm348 = vcmask 261120
      %v350 = vsel %vm348, %v335, 0
      %352 = vmatprep.subr.bf16.mxu0 0
      %353 = vmatpush1.bf16.msra.mxu0 0
      %354 = vmatprep.subr.bf16.mxu0 0
      %355 = vmatpush1.bf16.msra.mxu0 0
      %356 = vmatprep.subr.bf16.mxu0 0
      %357 = vmatpush1.bf16.msra.mxu0 0
      %358 = vmatprep.subr.bf16.mxu0 0
      %359 = vmatpush1.bf16.msra.mxu0 0
      %360 = vmatprep.subr.bf16.mxu0 0
      %361 = vmatpush1.bf16.msra.mxu0 0
      %362 = vmatprep.subr.bf16.mxu0 0
      %363 = vmatpush1.bf16.msra.mxu0 0
      %364 = vmatprep.subr.bf16.mxu0 0
      %365 = vmatpush1.bf16.msra.mxu0 %v345
      %366 = vmatprep.subr.bf16.mxu0 0
      %367 = vmatpush1.bf16.msra.mxu0 %v344
      %368 = vmatprep.subr.bf16.mxu0 0
      %369 = vmatpush2.bf16.msra.mxu0 0
      %370 = vmatprep.subr.bf16.mxu0 0
      %371 = vmatpush2.bf16.msra.mxu0 0
      %372 = vmatprep.subr.bf16.mxu0 0
      %373 = vmatpush2.bf16.msra.mxu0 0
      %374 = vmatprep.subr.bf16.mxu0 0
      %375 = vmatpush2.bf16.msra.mxu0 0
      %376 = vmatprep.subr.bf16.mxu0 0
      %377 = vmatpush2.bf16.msra.mxu0 0
      %378 = vmatprep.subr.bf16.mxu0 0
      %379 = vmatpush2.bf16.msra.mxu0 0
      %380 = vmatprep.subr.bf16.mxu0 0
      %381 = vmatpush2.bf16.msra.mxu0 0
      %382 = vmatprep.subr.bf16.mxu0 0
      %383 = vmatpush2.bf16.msra.mxu0 0
      %384 = vmatprep.mubr.bf16.mxu0 0
      %385 = vmatmul.mubr.bf16.gmra.mxu0 %v350
      %v386 = vpop.f32.mrf.mxu0
      %v387 = vadd.f32 0.0, %v386
      %v388 = vpop.f32.mrf.mxu0
      %v389 = vpop.f32.mrf.mxu0
      %v390 = vadd.f32 0.0, %v389
      %v391 = vpop.f32.mrf.mxu0
      %392 = vdwg.mxu0
      %v393 = vadd.f32 %v323, %v387
      %v394 = vadd.f32 %v324, %v390
      %395 = vst.msk [vmem:[#allocation2] sm:$0xff] %vm348, %v393
      %396 = vst.msk [vmem:[#allocation2 + $0x8] sm:$0xff] %vm348, %v394
      // Predicated region
      $region37: #{multi_head_attention.3} parent=31 // pred_check
        %p397 = pneg %p316
      $region38: #{multi_head_attention.3} parent=31 // pred_check_branch
        %399 = sbr.rel (%p397) target = $region40
      $region39: #{multi_head_attention.3} parent=31 // pred_region
        %v400 = vld [vmem:[#allocation2] sm:$0xff]
        %v401 = vld [vmem:[#allocation2 + $0x8] sm:$0xff]
        %v402 = vld [vmem:[%s301] sm:$0x1]
        %v404 = vlaneseq
        %v405 = vshrl.u32 %v404, 7
        %v406 = vsub.s32 0, %v405
        %v407 = vrot.slane %v402, %v406
        %v409 = vadd.f32 %v400, %v407
        %v410 = vadd.f32 %v401, %v407
        %v411 = vpack.c.bf16 %v410, %v409
        %v413 = vunpack.c.l.b16 %v411
        %v414 = vunpack.c.h.b16 %v411
        %v415 = vpack.c.b16 %v413, %v413
        %v416 = vpack.c.b16 %v414, %v414
        %vm419 = vcmask 257024
        %420 = vst.msk [vmem:[%s313] sm:$0xf] %vm419, %v415
        %421 = vst.msk [vmem:[%s313 + $0x4] sm:$0xf] %vm419, %v416
      $region40: #{multi_head_attention.3} parent=31 // pred_fallthru
        _
      %s422 = smul.u32 2, %s21
      %p423 = scmp.lt.s32.totalorder %s20, 2
      %s424 = scalar_select %p423, %s20, 2
      %p425 = scmp.lt.s32.totalorder %s422, 1
      %s426 = scalar_select %p425, %s422, 1
      %p427 = scmp.lt.s32.totalorder %s22, 0
      %s428 = scalar_select %p427, %s22, 0
      %s429 = sadd.s32 %s428, %s426
      %s430 = smul.addr %s424, 2
      %s431 = sadd.s32 %s429, %s430
      %s432 = smul.addr %s431, 4
      %s433 = scalar_lea.vmem %s3, %s432
      // Predicated region
      $region41: #{multi_head_attention.3} parent=31 // pred_check
        %p434 = pneg %p150
      $region42: #{multi_head_attention.3} parent=31 // pred_check_branch
        %436 = sbr.rel (%p434) target = $region44
      $region43: #{multi_head_attention.3} parent=31 // pred_region
        %s437 = smul.u32 2, %s21
      $region44: #{multi_head_attention.3} parent=31 // pred_fallthru
        _
    $region32: #{multi_head_attention.3} parent=5 // pred_fallthru
      _
    %p438 = scmp.le.s32.totalorder 2, %s9
    // Predicated region
    $region45: #{multi_head_attention.3} parent=5 // pred_check
      %p439 = pneg %p438
    $region46: #{multi_head_attention.3} parent=5 // pred_check_branch
      %441 = sbr.rel (%p439) target = $region48
    $region47: #{multi_head_attention.3} parent=5 // pred_region
      %s442 = ssub.s32 %s9, 2
      // Predicated region
      $region49: #{multi_head_attention.3} parent=47 // pred_check
        %p443 = pneg %p156
      $region50: #{multi_head_attention.3} parent=47 // pred_check_branch
        %445 = sbr.rel (%p443) target = $region52
      $region51: #{multi_head_attention.3} parent=47 // pred_region
        %s446 = smul.u32 2, %s25
        %p447 = scmp.lt.s32.totalorder %s24, 2
        %s448 = scalar_select %p447, %s24, 2
        %p449 = scmp.lt.s32.totalorder %s446, 1
        %s450 = scalar_select %p449, %s446, 1
        %p451 = scmp.lt.s32.totalorder %s26, 0
        %s452 = scalar_select %p451, %s26, 0
        %s453 = sadd.s32 %s452, %s450
        %s454 = smul.addr %s448, 2
        %s455 = sadd.s32 %s453, %s454
        %s456 = smul.addr %s455, 4
        %s457 = scalar_lea.vmem %s3, %s456
      $region52: #{multi_head_attention.3} parent=47 // pred_fallthru
        _
    $region48: #{multi_head_attention.3} parent=5 // pred_fallthru
      _
  $region6: #{multi_head_attention.3} parent=0 // loop_footer
    %s13 = sadd.s32 1, %s9
  $region7: #{multi_head_attention.3} parent=0 // loop_footer_branch
    %8 = sbr.rel target = $region3
  $region8: #{multi_head_attention.3} parent=0 // loop_exit
    _

// kernel: multi_head_attention.4
$region0: #{multi_head_attention.4}
  #allocation0 [shape = 'u32[]', space=smem, size = 0x4, offset = 0x4, fixed_abs, tag = 'smem constant byte address 0x4 - core index']
  #allocation1 [shape = 'u32[144,128]{1,0:T(1,128)}', space=vmem, size = 0x12000, scoped, tag = 'internal scratch']
  %s0 = inlined_call_operand.vmem [shape: bf16[3,2,8,32], index: 0, kind: input, shape index: {}]
  %s1 = inlined_call_operand.vmem [shape: bf16[2,8,32], index: 1, kind: output, shape index: {}]
  %s2 = sld [smem:[#allocation0]]
  $region78: #{multi_head_attention.4} parent=0
    _
  %s4 = ssub.s32 1, %s2
  %s5 = scalar_select 0, %s4, %s2
  $region1: #{multi_head_attention.4} parent=0
    #allocation2 [shape = 'u8[12288]{0}', space=vmem, size = 0x3000, scoped, tag = 'input window, operand 0']
    loop: start=0, step=1, limit=4
    $region2: #{multi_head_attention.4} parent=1 // loop_pre_header
      _
    $region3: #{multi_head_attention.4} parent=1 // loop_header
      %s7 = sphi 0, %s11
      %p8 = scmp.ge.s32.totalorder %s7, 4
      %s17 = sphi 0, %s19
      %s20 = sphi 0, %s17
      %s21 = sphi 0, %s20
      %s37 = sphi 0, %s21
      %s43 = sphi 0, %s45
      %s46 = sphi 0, %s43
      %s47 = sphi 0, %s46
      %s63 = sphi 0, %s47
    $region4: #{multi_head_attention.4} parent=1 // loop_header_branch
      %10 = sbr.rel (%p8) target = $region8
    $region5: #{multi_head_attention.4} parent=1 // loop_body
      %s12 = ssub.s32 %s7, 1
      %s13 = ssub.s32 %s7, 2
      %s14 = sadd.s32 %s7, 1
      %s15 = ssub.s32 %s7, %s14
      %p16 = scmp.eq.s32.totalorder %s15, 0
      %s18 = sadd.s32 %s17, 1
      %s19 = scalar_select %p16, %s17, %s18
      %p22 = pneg %p16
      %p23 = scmp.eq.s32.totalorder %s7, 1
      %p24 = por %p22, %p23
      %p25 = scmp.ne.s32.totalorder %s17, %s20
      %p26 = scmp.eq.s32.totalorder %s7, 0
      %p27 = por %p25, %p26
      %p28 = scmp.ne.s32.totalorder %s17, %s20
      %p29 = scmp.eq.s32.totalorder %s12, 1
      %p30 = por %p28, %p29
      %p31 = scmp.ne.s32.totalorder %s20, %s21
      %p32 = scmp.eq.s32.totalorder %s12, 0
      %p33 = por %p31, %p32
      %p34 = scmp.ne.s32.totalorder %s20, %s21
      %p35 = scmp.eq.s32.totalorder %s13, 1
      %p36 = por %p34, %p35
      %p38 = scmp.ne.s32.totalorder %s21, %s37
      %p39 = scmp.eq.s32.totalorder %s13, 0
      %p40 = por %p38, %p39
      %s41 = ssub.s32 %s7, %s14
      %p42 = scmp.eq.s32.totalorder %s41, 0
      %s44 = sadd.s32 %s43, 1
      %s45 = scalar_select %p42, %s43, %s44
      %p48 = pneg %p42
      %p49 = scmp.eq.s32.totalorder %s7, 1
      %p50 = por %p48, %p49
      %p51 = scmp.ne.s32.totalorder %s43, %s46
      %p52 = scmp.eq.s32.totalorder %s7, 0
      %p53 = por %p51, %p52
      %p54 = scmp.ne.s32.totalorder %s43, %s46
      %p55 = scmp.eq.s32.totalorder %s12, 1
      %p56 = por %p54, %p55
      %p57 = scmp.ne.s32.totalorder %s46, %s47
      %p58 = scmp.eq.s32.totalorder %s12, 0
      %p59 = por %p57, %p58
      %p60 = scmp.ne.s32.totalorder %s46, %s47
      %p61 = scmp.eq.s32.totalorder %s13, 1
      %p62 = por %p60, %p61
      %p64 = scmp.ne.s32.totalorder %s47, %s63
      %p65 = scmp.eq.s32.totalorder %s13, 0
      %p66 = por %p64, %p65
      %p67 = scmp.le.s32.totalorder 1, %s7
      %p68 = scmp.lt.s32.totalorder %s7, 3
      %p69 = pnand %p67, %p68
      %p70 = pneg %p69
      // Predicated region
      $region9: #{multi_head_attention.4} parent=5 // pred_check
        _
      $region10: #{multi_head_attention.4} parent=5 // pred_check_branch
        %72 = sbr.rel (%p69) target = $region12
      $region11: #{multi_head_attention.4} parent=5 // pred_region
        %s73 = ssub.s32 %s7, 1
      $region12: #{multi_head_attention.4} parent=5 // pred_fallthru
        _
      %p74 = scmp.lt.s32.totalorder %s7, 2
      // Predicated region
      $region13: #{multi_head_attention.4} parent=5 // pred_check
        %p75 = pneg %p74
      $region14: #{multi_head_attention.4} parent=5 // pred_check_branch
        %77 = sbr.rel (%p75) target = $region16
      $region15: #{multi_head_attention.4} parent=5 // pred_region
        // Predicated region
        $region17: #{multi_head_attention.4} parent=15 // pred_check
          %p78 = pneg %p27
        $region18: #{multi_head_attention.4} parent=15 // pred_check_branch
          %80 = sbr.rel (%p78) target = $region20
        $region19: #{multi_head_attention.4} parent=15 // pred_region
          %s81 = sand.u32 %s17, 1
          %s82 = sand.u32 %s17, 1
          %s83 = smul.addr %s82, 12
          %s84 = scalar_lea.vmem [#allocation2], %s83
          %s85 = smul.addr %s7, 4
          %s86 = scalar_lea.vmem %s0, %s85
          // Predicated region
          $region21: #{multi_head_attention.4} parent=19 // pred_check
            _
          $region22: #{multi_head_attention.4} parent=19 // pred_check_branch
            %88 = sbr.rel (0) target = $region24
          $region23: #{multi_head_attention.4} parent=19 // pred_region
            // Predicated region
            $region25: #{multi_head_attention.4} parent=23 // pred_check
              _
            $region26: #{multi_head_attention.4} parent=23 // pred_check_branch
              %90 = sbr.rel target = $region28
            $region27: #{multi_head_attention.4} parent=23 // pred_region
              // Predicated region
              $region40: #{multi_head_attention.4} parent=27 // pred_check
                _
              $region41: #{multi_head_attention.4} parent=27 // pred_check_branch
                %110 = sbr.rel (0) target = $region43
              $region42: #{multi_head_attention.4} parent=27 // pred_region
                loop: start=0, step=1, limit=1
                $region44: #{multi_head_attention.4} parent=42 // loop_pre_header
                  _
                $region45: #{multi_head_attention.4} parent=42 // loop_header
                  %s112 = sphi 0, %s116
                  %p113 = scmp.ge.s32.totalorder %s112, 1
                  %s117 = sphi %s86, %s86
                  %s118 = sphi %s84, %s84
                $region46: #{multi_head_attention.4} parent=42 // loop_header_branch
                  %115 = sbr.rel (%p113) target = $region50
                $region47: #{multi_head_attention.4} parent=42 // loop_body
                  _
                $region48: #{multi_head_attention.4} parent=42 // loop_footer
                  %s116 = sadd.s32 1, %s112
                $region49: #{multi_head_attention.4} parent=42 // loop_footer_branch
                  %111 = sbr.rel target = $region45
                $region50: #{multi_head_attention.4} parent=42 // loop_exit
                  _
                %s120 = ssub.s32 16, 1
                loop: start=0, step=1, limit=1
                $region51: #{multi_head_attention.4} parent=42 // loop_pre_header
                  _
                $region52: #{multi_head_attention.4} parent=42 // loop_header
                  %s122 = sphi 0, %s126
                  %p123 = scmp.ge.s32.totalorder %s122, 1
                  %s127 = sphi %s86, %s86
                  %s128 = sphi %s84, %s84
                $region53: #{multi_head_attention.4} parent=42 // loop_header_branch
                  %125 = sbr.rel (%p123) target = $region57
                $region54: #{multi_head_attention.4} parent=42 // loop_body
                  %v129 = vld [vmem:[%s127] sm:%s120]
                  %130 = vst [vmem:[%s128] sm:%s120] %v129
                  %v131 = vld [vmem:[%s127 + $0x8] sm:%s120]
                  %132 = vst [vmem:[%s128 + $0x4] sm:%s120] %v131
                  %v133 = vld [vmem:[%s127 + $0x10] sm:%s120]
                  %134 = vst [vmem:[%s128 + $0x8] sm:%s120] %v133
                $region55: #{multi_head_attention.4} parent=42 // loop_footer
                  %s126 = sadd.s32 1, %s122
                $region56: #{multi_head_attention.4} parent=42 // loop_footer_branch
                  %121 = sbr.rel target = $region52
                $region57: #{multi_head_attention.4} parent=42 // loop_exit
                  _
              $region43: #{multi_head_attention.4} parent=27 // pred_fallthru
                _
            $region28: #{multi_head_attention.4} parent=23 // pred_fallthru
              _
            // Predicated region
            $region29: #{multi_head_attention.4} parent=23 // pred_check
              _
            $region30: #{multi_head_attention.4} parent=23 // pred_check_branch
              %92 = sbr.rel (0) target = $region32
            $region31: #{multi_head_attention.4} parent=23 // pred_region
              %s94 = ssub.s32 16, 1
              loop: start=0, step=1, limit=1
              $region33: #{multi_head_attention.4} parent=31 // loop_pre_header
                _
              $region34: #{multi_head_attention.4} parent=31 // loop_header
                %s96 = sphi 0, %s100
                %p97 = scmp.ge.s32.totalorder %s96, 1
                %s101 = sphi %s86, %s86
                %s102 = sphi %s84, %s84
              $region35: #{multi_head_attention.4} parent=31 // loop_header_branch
                %99 = sbr.rel (%p97) target = $region39
              $region36: #{multi_head_attention.4} parent=31 // loop_body
                %v103 = vld [vmem:[%s101] sm:%s94]
                %104 = vst [vmem:[%s102] sm:%s94] %v103
                %v105 = vld [vmem:[%s101 + $0x8] sm:%s94]
                %106 = vst [vmem:[%s102 + $0x4] sm:%s94] %v105
                %v107 = vld [vmem:[%s101 + $0x10] sm:%s94]
                %108 = vst [vmem:[%s102 + $0x8] sm:%s94] %v107
              $region37: #{multi_head_attention.4} parent=31 // loop_footer
                %s100 = sadd.s32 1, %s96
              $region38: #{multi_head_attention.4} parent=31 // loop_footer_branch
                %95 = sbr.rel target = $region34
              $region39: #{multi_head_attention.4} parent=31 // loop_exit
                _
            $region32: #{multi_head_attention.4} parent=23 // pred_fallthru
              _
          $region24: #{multi_head_attention.4} parent=19 // pred_fallthru
            _
          %135 = vnop
        $region20: #{multi_head_attention.4} parent=15 // pred_fallthru
          _
      $region16: #{multi_head_attention.4} parent=5 // pred_fallthru
        _
      %p136 = scmp.le.s32.totalorder 1, %s7
      %p137 = scmp.lt.s32.totalorder %s7, 3
      %p138 = pnand %p136, %p137
      %p139 = pneg %p138
      // Predicated region
      $region58: #{multi_head_attention.4} parent=5 // pred_check
        _
      $region59: #{multi_head_attention.4} parent=5 // pred_check_branch
        %141 = sbr.rel (%p138) target = $region61
      $region60: #{multi_head_attention.4} parent=5 // pred_region
        %s142 = ssub.s32 %s7, 1
        %s143 = sand.u32 %s20, 1
        %s144 = sand.u32 %s20, 1
        %s145 = smul.addr %s144, 12
        %s146 = scalar_lea.vmem [#allocation2], %s145
        // Predicated region
        $region62: #{multi_head_attention.4} parent=60 // pred_check
          %p147 = pneg %p33
        $region63: #{multi_head_attention.4} parent=60 // pred_check_branch
          %149 = sbr.rel (%p147) target = $region65
        $region64: #{multi_head_attention.4} parent=60 // pred_region
          _
        $region65: #{multi_head_attention.4} parent=60 // pred_fallthru
          _
        %s150 = sand.u32 %s20, 1
        %s151 = sand.u32 %s20, 1
        %s152 = smul.addr %s151, 12
        %s153 = scalar_lea.vmem [#allocation2], %s152
        %p154 = pneg %p33
        %p155 = pneg %p30
        %p156 = pneg %p59
        %p157 = pneg %p56
        %p158 = scmp.lt.s32.totalorder %s12, 1
        %s159 = scalar_select %p158, %s12, 1
        %s160 = smul.addr %s159, 4
        %s161 = scalar_lea.vmem %s1, %s160
        %p162 = scmp.lt.s32.totalorder %s12, 1
        %s163 = scalar_select %p162, %s12, 1
        %s164 = smul.addr %s163, 4
        %s165 = scalar_lea.vmem %s1, %s164
        %v167 = vld [vmem:[%s146] sm:$0xf]
        %s168 = scalar_lea.vmem %s146, 4 [#allocation2]
        %v169 = vld [vmem:[%s168] sm:$0xf]
        %s170 = scalar_lea.vmem %s146, 8 [#allocation2]
        %v171 = vld [vmem:[%s170] sm:$0xf]
        %vm172 = vcmask 64512
        %v174 = vsel %vm172, %v167, 0
        %v177 = vsel %vm172, %v169, 0
        %179 = vmatprep.subr.bf16.mxu0 0
        %180 = vmatpush1.bf16.xpose.msra.mxu0 0
        %181 = vmatprep.subr.bf16.mxu0 0
        %182 = vmatpush1.bf16.xpose.msra.mxu0 0
        %183 = vmatprep.subr.bf16.mxu0 0
        %184 = vmatpush1.bf16.xpose.msra.mxu0 0
        %185 = vmatprep.subr.bf16.mxu0 0
        %186 = vmatpush1.bf16.xpose.msra.mxu0 0
        %187 = vmatprep.subr.bf16.mxu0 0
        %188 = vmatpush1.bf16.xpose.msra.mxu0 0
        %189 = vmatprep.subr.bf16.mxu0 0
        %190 = vmatpush1.bf16.xpose.msra.mxu0 0
        %191 = vmatprep.subr.bf16.mxu0 0
        %192 = vmatpush1.bf16.xpose.msra.mxu0 0
        %193 = vmatprep.subr.bf16.mxu0 0
        %194 = vmatpush1.bf16.xpose.msra.mxu0 %v177
        %195 = vmatprep.subr.bf16.mxu0 0
        %196 = vmatpush2.bf16.xpose.msra.mxu0 0
        %197 = vmatprep.subr.bf16.mxu0 0
        %198 = vmatpush2.bf16.xpose.msra.mxu0 0
        %199 = vmatprep.subr.bf16.mxu0 0
        %200 = vmatpush2.bf16.xpose.msra.mxu0 0
        %201 = vmatprep.subr.bf16.mxu0 0
        %202 = vmatpush2.bf16.xpose.msra.mxu0 0
        %203 = vmatprep.subr.bf16.mxu0 0
        %204 = vmatpush2.bf16.xpose.msra.mxu0 0
        %205 = vmatprep.subr.bf16.mxu0 0
        %206 = vmatpush2.bf16.xpose.msra.mxu0 0
        %207 = vmatprep.subr.bf16.mxu0 0
        %208 = vmatpush2.bf16.xpose.msra.mxu0 0
        %209 = vmatprep.subr.bf16.mxu0 0
        %210 = vmatpush2.bf16.xpose.msra.mxu0 0
        %211 = vmatprep.mubr.bf16.mxu0 0
        %212 = vmatmul.mubr.bf16.gmra.mxu0 %v174
        %v213 = vpop.f32.mrf.mxu0
        %v214 = vadd.f32 0.0, %v213
        %v215 = vpop.f32.mrf.mxu0
        %v216 = vpop.f32.mrf.mxu0
        %v217 = vpop.f32.mrf.mxu0
        %218 = vdwg.mxu0
        %v219 = vsel %vm172, %v214, -inf
        %220 = vmax.xlane.f32.xlu0 %v219
        %v221 = vpop.xlane.xlu0 %220
        %v222 = vsub.f32 %v214, %v221
        %v223 = vmul.f32 %v222, 1.442695
        %v224 = vpow.pop %v223
        %v225 = vsel %vm172, %v224, 0.0
        %226 = vadd.xlane.f32.xlu0 %v225
        %v227 = vpop.xlane.xlu0 %226
        %v228 = vpack.c.bf16 %v224, %v224
        %v230 = vsel %vm172, %v228, 0
        %vm232 = vcmask 1043456
        %v234 = vsel %vm232, %v171, 0
        %236 = vmatprep.subr.bf16.mxu0 0
        %237 = vmatpush1.bf16.msra.mxu0 0
        %238 = vmatprep.subr.bf16.mxu0 0
        %239 = vmatpush1.bf16.msra.mxu0 0
        %240 = vmatprep.subr.bf16.mxu0 0
        %241 = vmatpush1.bf16.msra.mxu0 0
        %242 = vmatprep.subr.bf16.mxu0 0
        %243 = vmatpush1.bf16.msra.mxu0 0
        %244 = vmatprep.subr.bf16.mxu0 0
        %245 = vmatpush1.bf16.msra.mxu0 0
        %246 = vmatprep.subr.bf16.mxu0 0
        %247 = vmatpush1.bf16.msra.mxu0 0
        %248 = vmatprep.subr.bf16.mxu0 0
        %249 = vmatpush1.bf16.msra.mxu0 0
        %250 = vmatprep.subr.bf16.mxu0 0
        %251 = vmatpush1.bf16.msra.mxu0 %v234
        %252 = vmatprep.subr.bf16.mxu0 0
        %253 = vmatpush2.bf16.msra.mxu0 0
        %254 = vmatprep.subr.bf16.mxu0 0
        %255 = vmatpush2.bf16.msra.mxu0 0
        %256 = vmatprep.subr.bf16.mxu0 0
        %257 = vmatpush2.bf16.msra.mxu0 0
        %258 = vmatprep.subr.bf16.mxu0 0
        %259 = vmatpush2.bf16.msra.mxu0 0
        %260 = vmatprep.subr.bf16.mxu0 0
        %261 = vmatpush2.bf16.msra.mxu0 0
        %262 = vmatprep.subr.bf16.mxu0 0
        %263 = vmatpush2.bf16.msra.mxu0 0
        %264 = vmatprep.subr.bf16.mxu0 0
        %265 = vmatpush2.bf16.msra.mxu0 0
        %266 = vmatprep.subr.bf16.mxu0 0
        %267 = vmatpush2.bf16.msra.mxu0 0
        %268 = vmatprep.mubr.bf16.mxu0 0
        %269 = vmatmul.mubr.bf16.gmra.mxu0 %v230
        %v270 = vpop.f32.mrf.mxu0
        %v271 = vadd.f32 0.0, %v270
        %v272 = vpop.f32.mrf.mxu0
        %v273 = vpop.f32.mrf.mxu0
        %v274 = vpop.f32.mrf.mxu0
        %275 = vdwg.mxu0
        %v276 = vrcp.pop %v227
        %v277 = vmul.f32 %v271, %v276
        %v279 = vunpack.c.l.b16 %v167
        %v280 = vpack.c.b16 %v279, %v279
        %281 = vrot.lane.b32.xlu0 %v280, 120
        %v282 = vpop.permute.xlu0 %281
        %v284 = vunpack.c.l.b16 %v169
        %v285 = vpack.c.b16 %v284, %v284
        %286 = vrot.lane.b32.xlu0 %v285, 120
        %v287 = vpop.permute.xlu0 %286
        %v289 = vsel %vm172, %v282, 0
        %v292 = vsel %vm172, %v287, 0
        %294 = vmatprep.subr.bf16.mxu0 0
        %295 = vmatpush1.bf16.xpose.msra.mxu0 0
        %296 = vmatprep.subr.bf16.mxu0 0
        %297 = vmatpush1.bf16.xpose.msra.mxu0 0
        %298 = vmatprep.subr.bf16.mxu0 0
        %299 = vmatpush1.bf16.xpose.msra.mxu0 0
        %300 = vmatprep.subr.bf16.mxu0 0
        %301 = vmatpush1.bf16.xpose.msra.mxu0 0
        %302 = vmatprep.subr.bf16.mxu0 0
        %303 = vmatpush1.bf16.xpose.msra.mxu0 0
        %304 = vmatprep.subr.bf16.mxu0 0
        %305 = vmatpush1.bf16.xpose.msra.mxu0 0
        %306 = vmatprep.subr.bf16.mxu0 0
        %307 = vmatpush1.bf16.xpose.msra.mxu0 0
        %308 = vmatprep.subr.bf16.mxu0 0
        %309 = vmatpush1.bf16.xpose.msra.mxu0 %v292
        %310 = vmatprep.subr.bf16.mxu0 0
        %311 = vmatpush2.bf16.xpose.msra.mxu0 0
        %312 = vmatprep.subr.bf16.mxu0 0
        %313 = vmatpush2.bf16.xpose.msra.mxu0 0
        %314 = vmatprep.subr.bf16.mxu0 0
        %315 = vmatpush2.bf16.xpose.msra.mxu0 0
        %316 = vmatprep.subr.bf16.mxu0 0
        %317 = vmatpush2.bf16.xpose.msra.mxu0 0
        %318 = vmatprep.subr.bf16.mxu0 0
        %319 = vmatpush2.bf16.xpose.msra.mxu0 0
        %320 = vmatprep.subr.bf16.mxu0 0
        %321 = vmatpush2.bf16.xpose.msra.mxu0 0
        %322 = vmatprep.subr.bf16.mxu0 0
        %323 = vmatpush2.bf16.xpose.msra.mxu0 0
        %324 = vmatprep.subr.bf16.mxu0 0
        %325 = vmatpush2.bf16.xpose.msra.mxu0 0
        %326 = vmatprep.mubr.bf16.mxu0 0
        %327 = vmatmul.mubr.bf16.gmra.mxu0 %v289
        %v328 = vpop.f32.mrf.mxu0
        %v329 = vadd.f32 0.0, %v328
        %v330 = vpop.f32.mrf.mxu0
        %v331 = vpop.f32.mrf.mxu0
        %v332 = vpop.f32.mrf.mxu0
        %333 = vdwg.mxu0
        %v334 = vsel %vm172, %v329, -inf
        %335 = vmax.xlane.f32.xlu0 %v334
        %v336 = vpop.xlane.xlu0 %335
        %v337 = vsub.f32 %v329, %v336
        %v338 = vmul.f32 %v337, 1.442695
        %v339 = vpow.pop %v338
        %v340 = vsel %vm172, %v339, 0.0
        %341 = vadd.xlane.f32.xlu0 %v340
        %v342 = vpop.xlane.xlu0 %341
        %v343 = vpack.c.bf16 %v339, %v339
        %v345 = vunpack.c.l.b16 %v171
        %v346 = vpack.c.b16 %v345, %v345
        %347 = vrot.lane.b32.xlu0 %v346, 120
        %v348 = vpop.permute.xlu0 %347
        %v350 = vsel %vm172, %v343, 0
        %v353 = vsel %vm232, %v348, 0
        %355 = vmatprep.subr.bf16.mxu0 0
        %356 = vmatpush1.bf16.msra.mxu0 0
        %357 = vmatprep.subr.bf16.mxu0 0
        %358 = vmatpush1.bf16.msra.mxu0 0
        %359 = vmatprep.subr.bf16.mxu0 0
        %360 = vmatpush1.bf16.msra.mxu0 0
        %361 = vmatprep.subr.bf16.mxu0 0
        %362 = vmatpush1.bf16.msra.mxu0 0
        %363 = vmatprep.subr.bf16.mxu0 0
        %364 = vmatpush1.bf16.msra.mxu0 0
        %365 = vmatprep.subr.bf16.mxu0 0
        %366 = vmatpush1.bf16.msra.mxu0 0
        %367 = vmatprep.subr.bf16.mxu0 0
        %368 = vmatpush1.bf16.msra.mxu0 0
        %369 = vmatprep.subr.bf16.mxu0 0
        %370 = vmatpush1.bf16.msra.mxu0 %v353
        %371 = vmatprep.subr.bf16.mxu0 0
        %372 = vmatpush2.bf16.msra.mxu0 0
        %373 = vmatprep.subr.bf16.mxu0 0
        %374 = vmatpush2.bf16.msra.mxu0 0
        %375 = vmatprep.subr.bf16.mxu0 0
        %376 = vmatpush2.bf16.msra.mxu0 0
        %377 = vmatprep.subr.bf16.mxu0 0
        %378 = vmatpush2.bf16.msra.mxu0 0
        %379 = vmatprep.subr.bf16.mxu0 0
        %380 = vmatpush2.bf16.msra.mxu0 0
        %381 = vmatprep.subr.bf16.mxu0 0
        %382 = vmatpush2.bf16.msra.mxu0 0
        %383 = vmatprep.subr.bf16.mxu0 0
        %384 = vmatpush2.bf16.msra.mxu0 0
        %385 = vmatprep.subr.bf16.mxu0 0
        %386 = vmatpush2.bf16.msra.mxu0 0
        %387 = vmatprep.mubr.bf16.mxu0 0
        %388 = vmatmul.mubr.bf16.gmra.mxu0 %v350
        %v389 = vpop.f32.mrf.mxu0
        %v390 = vadd.f32 0.0, %v389
        %v391 = vpop.f32.mrf.mxu0
        %v392 = vpop.f32.mrf.mxu0
        %v393 = vpop.f32.mrf.mxu0
        %394 = vdwg.mxu0
        %v395 = vrcp.pop %v342
        %v396 = vmul.f32 %v390, %v395
        %397 = vrot.lane.b32.xlu0 %v280, 112
        %v398 = vpop.permute.xlu0 %397
        %399 = vrot.lane.b32.xlu0 %v285, 112
        %v400 = vpop.permute.xlu0 %399
        %v402 = vsel %vm172, %v398, 0
        %v405 = vsel %vm172, %v400, 0
        %407 = vmatprep.subr.bf16.mxu0 0
        %408 = vmatpush1.bf16.xpose.msra.mxu0 0
        %409 = vmatprep.subr.bf16.mxu0 0
        %410 = vmatpush1.bf16.xpose.msra.mxu0 0
        %411 = vmatprep.subr.bf16.mxu0 0
        %412 = vmatpush1.bf16.xpose.msra.mxu0 0
        %413 = vmatprep.subr.bf16.mxu0 0
        %414 = vmatpush1.bf16.xpose.msra.mxu0 0
        %415 = vmatprep.subr.bf16.mxu0 0
        %416 = vmatpush1.bf16.xpose.msra.mxu0 0
        %417 = vmatprep.subr.bf16.mxu0 0
        %418 = vmatpush1.bf16.xpose.msra.mxu0 0
        %419 = vmatprep.subr.bf16.mxu0 0
        %420 = vmatpush1.bf16.xpose.msra.mxu0 0
        %421 = vmatprep.subr.bf16.mxu0 0
        %422 = vmatpush1.bf16.xpose.msra.mxu0 %v405
        %423 = vmatprep.subr.bf16.mxu0 0
        %424 = vmatpush2.bf16.xpose.msra.mxu0 0
        %425 = vmatprep.subr.bf16.mxu0 0
        %426 = vmatpush2.bf16.xpose.msra.mxu0 0
        %427 = vmatprep.subr.bf16.mxu0 0
        %428 = vmatpush2.bf16.xpose.msra.mxu0 0
        %429 = vmatprep.subr.bf16.mxu0 0
        %430 = vmatpush2.bf16.xpose.msra.mxu0 0
        %431 = vmatprep.subr.bf16.mxu0 0
        %432 = vmatpush2.bf16.xpose.msra.mxu0 0
        %433 = vmatprep.subr.bf16.mxu0 0
        %434 = vmatpush2.bf16.xpose.msra.mxu0 0
        %435 = vmatprep.subr.bf16.mxu0 0
        %436 = vmatpush2.bf16.xpose.msra.mxu0 0
        %437 = vmatprep.subr.bf16.mxu0 0
        %438 = vmatpush2.bf16.xpose.msra.mxu0 0
        %439 = vmatprep.mubr.bf16.mxu0 0
        %440 = vmatmul.mubr.bf16.gmra.mxu0 %v402
        %v441 = vpop.f32.mrf.mxu0
        %v442 = vadd.f32 0.0, %v441
        %v443 = vpop.f32.mrf.mxu0
        %v444 = vpop.f32.mrf.mxu0
        %v445 = vpop.f32.mrf.mxu0
        %446 = vdwg.mxu0
        %v447 = vsel %vm172, %v442, -inf
        %448 = vmax.xlane.f32.xlu0 %v447
        %v449 = vpop.xlane.xlu0 %448
        %v450 = vsub.f32 %v442, %v449
        %v451 = vmul.f32 %v450, 1.442695
        %v452 = vpow.pop %v451
        %v453 = vsel %vm172, %v452, 0.0
        %454 = vadd.xlane.f32.xlu0 %v453
        %v455 = vpop.xlane.xlu0 %454
        %v456 = vpack.c.bf16 %v452, %v452
        %457 = vrot.lane.b32.xlu0 %v346, 112
        %v458 = vpop.permute.xlu0 %457
        %v460 = vsel %vm172, %v456, 0
        %v463 = vsel %vm232, %v458, 0
        %465 = vmatprep.subr.bf16.mxu0 0
        %466 = vmatpush1.bf16.msra.mxu0 0
        %467 = vmatprep.subr.bf16.mxu0 0
        %468 = vmatpush1.bf16.msra.mxu0 0
        %469 = vmatprep.subr.bf16.mxu0 0
        %470 = vmatpush1.bf16.msra.mxu0 0
        %471 = vmatprep.subr.bf16.mxu0 0
        %472 = vmatpush1.bf16.msra.mxu0 0
        %473 = vmatprep.subr.bf16.mxu0 0
        %474 = vmatpush1.bf16.msra.mxu0 0
        %475 = vmatprep.subr.bf16.mxu0 0
        %476 = vmatpush1.bf16.msra.mxu0 0
        %477 = vmatprep.subr.bf16.mxu0 0
        %478 = vmatpush1.bf16.msra.mxu0 0
        %479 = vmatprep.subr.bf16.mxu0 0
        %480 = vmatpush1.bf16.msra.mxu0 %v463
        %481 = vmatprep.subr.bf16.mxu0 0
        %482 = vmatpush2.bf16.msra.mxu0 0
        %483 = vmatprep.subr.bf16.mxu0 0
        %484 = vmatpush2.bf16.msra.mxu0 0
        %485 = vmatprep.subr.bf16.mxu0 0
        %486 = vmatpush2.bf16.msra.mxu0 0
        %487 = vmatprep.subr.bf16.mxu0 0
        %488 = vmatpush2.bf16.msra.mxu0 0
        %489 = vmatprep.subr.bf16.mxu0 0
        %490 = vmatpush2.bf16.msra.mxu0 0
        %491 = vmatprep.subr.bf16.mxu0 0
        %492 = vmatpush2.bf16.msra.mxu0 0
        %493 = vmatprep.subr.bf16.mxu0 0
        %494 = vmatpush2.bf16.msra.mxu0 0
        %495 = vmatprep.subr.bf16.mxu0 0
        %496 = vmatpush2.bf16.msra.mxu0 0
        %497 = vmatprep.mubr.bf16.mxu0 0
        %498 = vmatmul.mubr.bf16.gmra.mxu0 %v460
        %v499 = vpop.f32.mrf.mxu0
        %v500 = vadd.f32 0.0, %v499
        %v501 = vpop.f32.mrf.mxu0
        %v502 = vpop.f32.mrf.mxu0
        %v503 = vpop.f32.mrf.mxu0
        %504 = vdwg.mxu0
        %v505 = vrcp.pop %v455
        %v506 = vmul.f32 %v500, %v505
        %507 = vrot.lane.b32.xlu0 %v280, 104
        %v508 = vpop.permute.xlu0 %507
        %509 = vrot.lane.b32.xlu0 %v285, 104
        %v510 = vpop.permute.xlu0 %509
        %v512 = vsel %vm172, %v508, 0
        %v515 = vsel %vm172, %v510, 0
        %517 = vmatprep.subr.bf16.mxu0 0
        %518 = vmatpush1.bf16.xpose.msra.mxu0 0
        %519 = vmatprep.subr.bf16.mxu0 0
        %520 = vmatpush1.bf16.xpose.msra.mxu0 0
        %521 = vmatprep.subr.bf16.mxu0 0
        %522 = vmatpush1.bf16.xpose.msra.mxu0 0
        %523 = vmatprep.subr.bf16.mxu0 0
        %524 = vmatpush1.bf16.xpose.msra.mxu0 0
        %525 = vmatprep.subr.bf16.mxu0 0
        %526 = vmatpush1.bf16.xpose.msra.mxu0 0
        %527 = vmatprep.subr.bf16.mxu0 0
        %528 = vmatpush1.bf16.xpose.msra.mxu0 0
        %529 = vmatprep.subr.bf16.mxu0 0
        %530 = vmatpush1.bf16.xpose.msra.mxu0 0
        %531 = vmatprep.subr.bf16.mxu0 0
        %532 = vmatpush1.bf16.xpose.msra.mxu0 %v515
        %533 = vmatprep.subr.bf16.mxu0 0
        %534 = vmatpush2.bf16.xpose.msra.mxu0 0
        %535 = vmatprep.subr.bf16.mxu0 0
        %536 = vmatpush2.bf16.xpose.msra.mxu0 0
        %537 = vmatprep.subr.bf16.mxu0 0
        %538 = vmatpush2.bf16.xpose.msra.mxu0 0
        %539 = vmatprep.subr.bf16.mxu0 0
        %540 = vmatpush2.bf16.xpose.msra.mxu0 0
        %541 = vmatprep.subr.bf16.mxu0 0
        %542 = vmatpush2.bf16.xpose.msra.mxu0 0
        %543 = vmatprep.subr.bf16.mxu0 0
        %544 = vmatpush2.bf16.xpose.msra.mxu0 0
        %545 = vmatprep.subr.bf16.mxu0 0
        %546 = vmatpush2.bf16.xpose.msra.mxu0 0
        %547 = vmatprep.subr.bf16.mxu0 0
        %548 = vmatpush2.bf16.xpose.msra.mxu0 0
        %549 = vmatprep.mubr.bf16.mxu0 0
        %550 = vmatmul.mubr.bf16.gmra.mxu0 %v512
        %v551 = vpop.f32.mrf.mxu0
        %v552 = vadd.f32 0.0, %v551
        %v553 = vpop.f32.mrf.mxu0
        %v554 = vpop.f32.mrf.mxu0
        %v555 = vpop.f32.mrf.mxu0
        %556 = vdwg.mxu0
        %v557 = vsel %vm172, %v552, -inf
        %558 = vmax.xlane.f32.xlu0 %v557
        %v559 = vpop.xlane.xlu0 %558
        %v560 = vsub.f32 %v552, %v559
        %v561 = vmul.f32 %v560, 1.442695
        %v562 = vpow.pop %v561
        %v563 = vsel %vm172, %v562, 0.0
        %564 = vadd.xlane.f32.xlu0 %v563
        %v565 = vpop.xlane.xlu0 %564
        %v566 = vpack.c.bf16 %v562, %v562
        %567 = vrot.lane.b32.xlu0 %v346, 104
        %v568 = vpop.permute.xlu0 %567
        %v570 = vsel %vm172, %v566, 0
        %v573 = vsel %vm232, %v568, 0
        %575 = vmatprep.subr.bf16.mxu0 0
        %576 = vmatpush1.bf16.msra.mxu0 0
        %577 = vmatprep.subr.bf16.mxu0 0
        %578 = vmatpush1.bf16.msra.mxu0 0
        %579 = vmatprep.subr.bf16.mxu0 0
        %580 = vmatpush1.bf16.msra.mxu0 0
        %581 = vmatprep.subr.bf16.mxu0 0
        %582 = vmatpush1.bf16.msra.mxu0 0
        %583 = vmatprep.subr.bf16.mxu0 0
        %584 = vmatpush1.bf16.msra.mxu0 0
        %585 = vmatprep.subr.bf16.mxu0 0
        %586 = vmatpush1.bf16.msra.mxu0 0
        %587 = vmatprep.subr.bf16.mxu0 0
        %588 = vmatpush1.bf16.msra.mxu0 0
        %589 = vmatprep.subr.bf16.mxu0 0
        %590 = vmatpush1.bf16.msra.mxu0 %v573
        %591 = vmatprep.subr.bf16.mxu0 0
        %592 = vmatpush2.bf16.msra.mxu0 0
        %593 = vmatprep.subr.bf16.mxu0 0
        %594 = vmatpush2.bf16.msra.mxu0 0
        %595 = vmatprep.subr.bf16.mxu0 0
        %596 = vmatpush2.bf16.msra.mxu0 0
        %597 = vmatprep.subr.bf16.mxu0 0
        %598 = vmatpush2.bf16.msra.mxu0 0
        %599 = vmatprep.subr.bf16.mxu0 0
        %600 = vmatpush2.bf16.msra.mxu0 0
        %601 = vmatprep.subr.bf16.mxu0 0
        %602 = vmatpush2.bf16.msra.mxu0 0
        %603 = vmatprep.subr.bf16.mxu0 0
        %604 = vmatpush2.bf16.msra.mxu0 0
        %605 = vmatprep.subr.bf16.mxu0 0
        %606 = vmatpush2.bf16.msra.mxu0 0
        %607 = vmatprep.mubr.bf16.mxu0 0
        %608 = vmatmul.mubr.bf16.gmra.mxu0 %v570
        %v609 = vpop.f32.mrf.mxu0
        %v610 = vadd.f32 0.0, %v609
        %v611 = vpop.f32.mrf.mxu0
        %v612 = vpop.f32.mrf.mxu0
        %v613 = vpop.f32.mrf.mxu0
        %614 = vdwg.mxu0
        %v615 = vrcp.pop %v565
        %v616 = vmul.f32 %v610, %v615
        %618 = vrot.lane.b32.xlu0 %v396, 8
        %v619 = vpop.permute.xlu0 %618
        %622 = vrot.lane.b32.xlu0 %v506, 16
        %v623 = vpop.permute.xlu0 %622
        %626 = vrot.lane.b32.xlu0 %v616, 24
        %v627 = vpop.permute.xlu0 %626
        %v629 = vsel %vm172, %v277, %v619
        %vm630 = vcmask 130048
        %v631 = vsel %vm630, %v629, %v623
        %vm632 = vcmask 195584
        %v633 = vsel %vm632, %v631, %v627
        %v634 = vpack.c.bf16 %v633, %v633
        %vm635 = vcmask 257024
        %636 = vst.msk [vmem:[%s165] sm:$0xf] %vm635, %v634
        %p637 = scmp.lt.s32.totalorder %s12, 1
        %s638 = scalar_select %p637, %s12, 1
        %s639 = smul.addr %s638, 4
        %s640 = scalar_lea.vmem %s1, %s639
        // Predicated region
        $region66: #{multi_head_attention.4} parent=60 // pred_check
          %p641 = pneg %p56
        $region67: #{multi_head_attention.4} parent=60 // pred_check_branch
          %643 = sbr.rel (%p641) target = $region69
        $region68: #{multi_head_attention.4} parent=60 // pred_region
          _
        $region69: #{multi_head_attention.4} parent=60 // pred_fallthru
          _
      $region61: #{multi_head_attention.4} parent=5 // pred_fallthru
        _
      %p644 = scmp.le.s32.totalorder 2, %s7
      // Predicated region
      $region70: #{multi_head_attention.4} parent=5 // pred_check
        %p645 = pneg %p644
      $region71: #{multi_head_attention.4} parent=5 // pred_check_branch
        %647 = sbr.rel (%p645) target = $region73
      $region72: #{multi_head_attention.4} parent=5 // pred_region
        %s648 = ssub.s32 %s7, 2
        // Predicated region
        $region74: #{multi_head_attention.4} parent=72 // pred_check
          %p649 = pneg %p62
        $region75: #{multi_head_attention.4} parent=72 // pred_check_branch
          %651 = sbr.rel (%p649) target = $region77
        $region76: #{multi_head_attention.4} parent=72 // pred_region
          %p652 = scmp.lt.s32.totalorder %s13, 1
          %s653 = scalar_select %p652, %s13, 1
          %s654 = smul.addr %s653, 4
          %s655 = scalar_lea.vmem %s1, %s654
        $region77: #{multi_head_attention.4} parent=72 // pred_fallthru
          _
      $region73: #{multi_head_attention.4} parent=5 // pred_fallthru
        _
    $region6: #{multi_head_attention.4} parent=1 // loop_footer
      %s11 = sadd.s32 1, %s7
    $region7: #{multi_head_attention.4} parent=1 // loop_footer_branch
      %6 = sbr.rel target = $region3
    $region8: #{multi_head_attention.4} parent=1 // loop_exit
      _

</llo_original>
